<compile_context>
chip_gen: v5e
topology: v5e:2x2
jax: 0.10.0
libtpu: 0.0.40
codegen_flags: <defaults>
</compile_context>

<pallas_src>
import functools

import jax
import jax.numpy as jnp
from jax import lax
from jax.experimental import pallas as pl
from jax.experimental.pallas import tpu as pltpu

_NEG_INF = -1e30


def _round_up(x, m):
    return ((x + m - 1) // m) * m


def _flash_linear_attention_kernel(
        # inputs
        xq_ref, xkv_ref, wq_ref, bq_ref, wkv_ref, bkv_ref,
        # outputs
        o_ref,
        # scratch
        q_scr, m_scr, l_scr, acc_scr,
        # static config
        *, n_valid, n_pad, tk, d_pad):
    kv = pl.program_id(1)
    n_kv = pl.num_programs(1)

    @pl.when(kv == 0)
    def _init():
        # Q projection for this query tile (computed once, reused across all KV tiles).
        q = jnp.dot(xq_ref[...], wq_ref[...],
                    preferred_element_type=jnp.float32) + bq_ref[...].astype(jnp.float32)
        q_scr[...] = q.astype(q_scr.dtype)
        m_scr[...] = jnp.full_like(m_scr, _NEG_INF)
        l_scr[...] = jnp.zeros_like(l_scr)
        acc_scr[...] = jnp.zeros_like(acc_scr)

    # Fused K/V projection for this KV tile: one lane-dense [tk, D] x [D, 2D] matmul.
    kvp = jnp.dot(xkv_ref[...], wkv_ref[...],
                  preferred_element_type=jnp.float32) + bkv_ref[...].astype(jnp.float32)
    k = kvp[:, :d_pad].astype(xkv_ref.dtype)
    v = kvp[:, d_pad:].astype(xkv_ref.dtype)

    # scores = Q @ K^T without materializing a transpose: contract the feature dims.
    s = lax.dot_general(q_scr[...], k, (((1,), (1,)), ((), ())),
                        preferred_element_type=jnp.float32)
    tq = s.shape[0]

    if n_valid < n_pad:  # static: mask padded key tokens (their K would be the bias, not zero)
        key_idx = kv * tk + lax.broadcasted_iota(jnp.int32, (tq, tk), 1)
        s = jnp.where(key_idx < n_valid, s, _NEG_INF)

    # Online-softmax update.
    m_prev = m_scr[...]
    m_new = jnp.maximum(m_prev, jnp.max(s, axis=-1, keepdims=True))
    alpha = jnp.exp(m_prev - m_new)
    p = jnp.exp(s - m_new)
    l_scr[...] = alpha * l_scr[...] + jnp.sum(p, axis=-1, keepdims=True)
    acc_scr[...] = alpha * acc_scr[...] + jnp.dot(
        p.astype(v.dtype), v, preferred_element_type=jnp.float32)
    m_scr[...] = m_new

    @pl.when(kv == n_kv - 1)
    def _finalize():
        l = l_scr[...]
        r = pl.reciprocal(l, approx=True)   # EUP vrcp (free slot)
        r = r * (2.0 - l * r)               # one Newton step -> ~f32-exact reciprocal
        o_ref[...] = (acc_scr[...] * r).astype(o_ref.dtype)


def linear_attention(x, wq, bq, wk, bk, wv, bv, *, block_n=256):
    """x: [N, D]; w*: [D, D] (PyTorch [out, in] layout); b*: [D].

    Returns softmax(Q @ K^T) @ V with Q/K/V = x @ W*^T + b*.
    block_n: token tile size (256 suits v6e/v7x; use 128 on v5e).
    """
    N, D = x.shape
    dtype = x.dtype

    d_pad = _round_up(D, 128)                  # lane-dense feature dim
    tile = min(block_n, _round_up(N, 128))     # token tile (query and KV)
    n_pad = _round_up(N, tile)
    nq = n_pad // tile
    nk = n_pad // tile

    # Pad activations; pre-transpose (and fuse K|V) weights in the wrapper (one-time plumbing).
    xp = jnp.pad(x, ((0, n_pad - N), (0, d_pad - D)))

    def pad_wt(w):  # [D_out, D_in] -> transposed + padded [d_pad, d_pad]
        return jnp.pad(w.T, ((0, d_pad - D), (0, d_pad - D)))

    wq_t = pad_wt(wq).astype(dtype)
    wkv = jnp.concatenate([pad_wt(wk), pad_wt(wv)], axis=1).astype(dtype)   # [D, 2D]
    bq_p = jnp.pad(bq, (0, d_pad - D)).reshape(1, d_pad).astype(dtype)
    bkv = jnp.concatenate([jnp.pad(bk, (0, d_pad - D)),
                           jnp.pad(bv, (0, d_pad - D))]).reshape(1, 2 * d_pad).astype(dtype)

    kernel = functools.partial(_flash_linear_attention_kernel,
                               n_valid=N, n_pad=n_pad, tk=tile, d_pad=d_pad)

    itemsize = jnp.dtype(dtype).itemsize
    cost = pl.CostEstimate(
        flops=2 * n_pad * d_pad * 3 * d_pad + 4 * n_pad * n_pad * d_pad,
        transcendentals=n_pad * n_pad,
        bytes_accessed=(2 * n_pad * d_pad + 3 * d_pad * d_pad + 3 * d_pad) * itemsize,
    )

    out = pl.pallas_call(
        kernel,
        out_shape=jax.ShapeDtypeStruct((n_pad, d_pad), dtype),
        grid_spec=pltpu.PrefetchScalarGridSpec(
            num_scalar_prefetch=0,
            grid=(nq, nk),
            in_specs=[
                pl.BlockSpec((tile, d_pad), lambda qi, ki: (qi, 0)),      # x (query side)
                pl.BlockSpec((tile, d_pad), lambda qi, ki: (ki, 0)),      # x (KV side)
                pl.BlockSpec((d_pad, d_pad), lambda qi, ki: (0, 0)),      # Wq^T (resident)
                pl.BlockSpec((1, d_pad), lambda qi, ki: (0, 0)),          # bq
                pl.BlockSpec((d_pad, 2 * d_pad), lambda qi, ki: (0, 0)),  # [Wk^T | Wv^T]
                pl.BlockSpec((1, 2 * d_pad), lambda qi, ki: (0, 0)),      # [bk | bv]
            ],
            out_specs=pl.BlockSpec((tile, d_pad), lambda qi, ki: (qi, 0)),
            scratch_shapes=[
                pltpu.VMEM((tile, d_pad), dtype),        # Q tile
                pltpu.VMEM((tile, 1), jnp.float32),      # running max
                pltpu.VMEM((tile, 1), jnp.float32),      # running sum
                pltpu.VMEM((tile, d_pad), jnp.float32),  # output accumulator
            ],
        ),
        compiler_params=pltpu.CompilerParams(
            dimension_semantics=("parallel", "arbitrary"),
            vmem_limit_bytes=32 * 1024 * 1024,
        ),
        cost_estimate=cost,
    )(xp, xp, wq_t, bq_p, wkv, bkv)

    return out[:N, :D]


def _reference(x, wq, bq, wk, bk, wv, bv):
    q = x @ wq.T + bq
    k = x @ wk.T + bk
    v = x @ wv.T + bv
    s = q @ k.T
    w = jax.nn.softmax(s, axis=-1)
    return w @ v


if __name__ == "__main__":
    N, D = 8, 32  # N tokens, in_dim = D (matches the nn.Module forward on a [N, D] input)
    key = jax.random.PRNGKey(0)
    kx, kwq, kbq, kwk, kbk, kwv, kbv = jax.random.split(key, 7)

    bound = 1.0 / (D ** 0.5)
    x = jax.random.normal(kx, (N, D), dtype=jnp.float32)
    wq = jax.random.uniform(kwq, (D, D), jnp.float32, -bound, bound)
    bq = jax.random.uniform(kbq, (D,), jnp.float32, -bound, bound)
    wk = jax.random.uniform(kwk, (D, D), jnp.float32, -bound, bound)
    bk = jax.random.uniform(kbk, (D,), jnp.float32, -bound, bound)
    wv = jax.random.uniform(kwv, (D, D), jnp.float32, -bound, bound)
    bv = jax.random.uniform(kbv, (D,), jnp.float32, -bound, bound)

    out = linear_attention(x, wq, bq, wk, bk, wv, bv)
    jax.block_until_ready(out)

    ref = _reference(x, wq, bq, wk, bk, wv, bv)
    assert out.shape == (N, D)
    assert jnp.allclose(out, ref, atol=5e-4, rtol=5e-4), "mismatch vs reference"
    print("KERNEL_OK")
</pallas_src>

<mosaic_0001>
module attributes {stable_mosaic.version = 11 : i64} {
  func.func @_flash_linear_attention_kernel(%arg0: i32, %arg1: i32, %arg2: memref<128x128xf32, #tpu.memory_space<vmem>>, %arg3: memref<128x128xf32, #tpu.memory_space<vmem>>, %arg4: memref<128x128xf32, #tpu.memory_space<vmem>>, %arg5: memref<1x128xf32, #tpu.memory_space<vmem>>, %arg6: memref<128x256xf32, #tpu.memory_space<vmem>>, %arg7: memref<1x256xf32, #tpu.memory_space<vmem>>, %arg8: memref<128x128xf32, #tpu.memory_space<vmem>>, %arg9: memref<128x128xf32, #tpu.memory_space<vmem>>, %arg10: memref<128x1xf32, #tpu.memory_space<vmem>>, %arg11: memref<128x1xf32, #tpu.memory_space<vmem>>, %arg12: memref<128x128xf32, #tpu.memory_space<vmem>>) attributes {dimension_semantics = [#tpu.dimension_semantics<parallel>, #tpu.dimension_semantics<arbitrary>], iteration_bounds = array<i64: 1, 1>, scalar_prefetch = 0 : i64, scratch_operands = 4 : i64, tpu.core_type = #tpu.core_type<tc>, window_params = [{transform_indices = @transform_0, window_bounds = array<i64: 128, 128>}, {transform_indices = @transform_1, window_bounds = array<i64: 128, 128>}, {pipeline_mode = #tpu.pipeline_mode<synchronous>, transform_indices = @transform_2, window_bounds = array<i64: 128, 128>}, {pipeline_mode = #tpu.pipeline_mode<synchronous>, transform_indices = @transform_3, window_bounds = array<i64: 1, 128>}, {pipeline_mode = #tpu.pipeline_mode<synchronous>, transform_indices = @transform_4, window_bounds = array<i64: 128, 256>}, {pipeline_mode = #tpu.pipeline_mode<synchronous>, transform_indices = @transform_5, window_bounds = array<i64: 1, 256>}, {transform_indices = @transform_6, window_bounds = array<i64: 128, 128>}]} {
    %c0_i32 = arith.constant 0 : i32
    %0 = arith.cmpi eq, %arg1, %c0_i32 : i32
    %1 = arith.extui %0 : i1 to i32
    %c0_i32_0 = arith.constant 0 : i32
    %2 = arith.cmpi ne, %1, %c0_i32_0 : i32
    scf.if %2 {
      %c0_27 = arith.constant 0 : index
      %c0_28 = arith.constant 0 : index
      %46 = vector.load %arg2[%c0_27, %c0_28] : memref<128x128xf32, #tpu.memory_space<vmem>>, vector<128x128xf32>
      %c0_29 = arith.constant 0 : index
      %c0_30 = arith.constant 0 : index
      %47 = vector.load %arg4[%c0_29, %c0_30] : memref<128x128xf32, #tpu.memory_space<vmem>>, vector<128x128xf32>
      %cst_31 = arith.constant dense<0.000000e+00> : vector<128x128xf32>
      %48 = tpu.matmul %46, %47, %cst_31 {dimension_numbers = #tpu.dot_dimension_numbers<[1], [0], [0], [1], [0, 0, 1, 1], [], []>} : vector<128x128xf32>, vector<128x128xf32>, vector<128x128xf32> -> vector<128x128xf32>
      %c0_32 = arith.constant 0 : index
      %c0_33 = arith.constant 0 : index
      %49 = vector.load %arg5[%c0_32, %c0_33] : memref<1x128xf32, #tpu.memory_space<vmem>>, vector<1x128xf32>
      %50 = vector.broadcast %49 : vector<1x128xf32> to vector<128x128xf32>
      %51 = arith.addf %48, %50 : vector<128x128xf32>
      %c0_34 = arith.constant 0 : index
      %c0_35 = arith.constant 0 : index
      %52 = vector.load %arg9[%c0_34, %c0_35] : memref<128x128xf32, #tpu.memory_space<vmem>>, vector<128x128xf32>
      tpu.vector_store %arg9[%c0_34, %c0_35], %51 {strides = array<i32>} : memref<128x128xf32, #tpu.memory_space<vmem>>, vector<128x128xf32>,
      %cst_36 = arith.constant -1.000000e+30 : f32
      %53 = vector.broadcast %cst_36 : f32 to vector<128x1xf32>
      %c0_37 = arith.constant 0 : index
      %c0_38 = arith.constant 0 : index
      %54 = vector.load %arg10[%c0_37, %c0_38] : memref<128x1xf32, #tpu.memory_space<vmem>>, vector<128x1xf32>
      tpu.vector_store %arg10[%c0_37, %c0_38], %53 {strides = array<i32>} : memref<128x1xf32, #tpu.memory_space<vmem>>, vector<128x1xf32>,
      %cst_39 = arith.constant 0.000000e+00 : f32
      %55 = vector.broadcast %cst_39 : f32 to vector<128x1xf32>
      %c0_40 = arith.constant 0 : index
      %c0_41 = arith.constant 0 : index
      %56 = vector.load %arg11[%c0_40, %c0_41] : memref<128x1xf32, #tpu.memory_space<vmem>>, vector<128x1xf32>
      tpu.vector_store %arg11[%c0_40, %c0_41], %55 {strides = array<i32>} : memref<128x1xf32, #tpu.memory_space<vmem>>, vector<128x1xf32>,
      %cst_42 = arith.constant 0.000000e+00 : f32
      %57 = vector.broadcast %cst_42 : f32 to vector<128x128xf32>
      %c0_43 = arith.constant 0 : index
      %c0_44 = arith.constant 0 : index
      %58 = vector.load %arg12[%c0_43, %c0_44] : memref<128x128xf32, #tpu.memory_space<vmem>>, vector<128x128xf32>
      tpu.vector_store %arg12[%c0_43, %c0_44], %57 {strides = array<i32>} : memref<128x128xf32, #tpu.memory_space<vmem>>, vector<128x128xf32>,
    } else {
    }
    %c0 = arith.constant 0 : index
    %c0_1 = arith.constant 0 : index
    %3 = vector.load %arg3[%c0, %c0_1] : memref<128x128xf32, #tpu.memory_space<vmem>>, vector<128x128xf32>
    %c0_2 = arith.constant 0 : index
    %c0_3 = arith.constant 0 : index
    %4 = vector.load %arg6[%c0_2, %c0_3] : memref<128x256xf32, #tpu.memory_space<vmem>>, vector<128x256xf32>
    %cst = arith.constant dense<0.000000e+00> : vector<128x256xf32>
    %5 = tpu.matmul %3, %4, %cst {dimension_numbers = #tpu.dot_dimension_numbers<[1], [0], [0], [1], [0, 0, 1, 1], [], []>} : vector<128x128xf32>, vector<128x256xf32>, vector<128x256xf32> -> vector<128x256xf32>
    %c0_4 = arith.constant 0 : index
    %c0_5 = arith.constant 0 : index
    %6 = vector.load %arg7[%c0_4, %c0_5] : memref<1x256xf32, #tpu.memory_space<vmem>>, vector<1x256xf32>
    %7 = vector.broadcast %6 : vector<1x256xf32> to vector<128x256xf32>
    %8 = arith.addf %5, %7 : vector<128x256xf32>
    %9 = vector.extract_strided_slice %8 {offsets = [0, 0], sizes = [128, 128], strides = [1, 1]} : vector<128x256xf32> to vector<128x128xf32>
    %10 = vector.extract_strided_slice %8 {offsets = [0, 128], sizes = [128, 128], strides = [1, 1]} : vector<128x256xf32> to vector<128x128xf32>
    %c0_6 = arith.constant 0 : index
    %c0_7 = arith.constant 0 : index
    %11 = vector.load %arg9[%c0_6, %c0_7] : memref<128x128xf32, #tpu.memory_space<vmem>>, vector<128x128xf32>
    %cst_8 = arith.constant dense<0.000000e+00> : vector<128x128xf32>
    %12 = tpu.matmul %11, %9, %cst_8 {dimension_numbers = #tpu.dot_dimension_numbers<[1], [1], [0], [0], [0, 0, 1, 0], [], []>} : vector<128x128xf32>, vector<128x128xf32>, vector<128x128xf32> -> vector<128x128xf32>
    %c128_i32 = arith.constant 128 : i32
    %13 = arith.muli %arg1, %c128_i32 : i32
    %14 = tpu.iota {dimensions = array<i32: 1>} : vector<128x128xi32>
    %15 = vector.broadcast %13 : i32 to vector<128x128xi32>
    %16 = arith.addi %15, %14 : vector<128x128xi32>
    %c8_i32 = arith.constant 8 : i32
    %17 = vector.broadcast %c8_i32 : i32 to vector<128x128xi32>
    %18 = arith.cmpi slt, %16, %17 : vector<128x128xi32>
    %cst_9 = arith.constant -1.000000e+30 : f32
    %19 = vector.broadcast %cst_9 : f32 to vector<128x128xf32>
    %20 = arith.select %18, %12, %19 : vector<128x128xi1>, vector<128x128xf32>
    %c0_10 = arith.constant 0 : index
    %c0_11 = arith.constant 0 : index
    %21 = vector.load %arg10[%c0_10, %c0_11] : memref<128x1xf32, #tpu.memory_space<vmem>>, vector<128x1xf32>
    %cst_12 = arith.constant dense<0xFF800000> : vector<128xf32>
    %22 = vector.multi_reduction <maximumf>, %20, %cst_12 [1] : vector<128x128xf32> to vector<128xf32>
    %23 = vector.shape_cast %22 : vector<128xf32> to vector<128x1xf32>
    %24 = arith.maximumf %21, %23 : vector<128x1xf32>
    %25 = arith.subf %21, %24 : vector<128x1xf32>
    %26 = math.exp %25 : vector<128x1xf32>
    %27 = vector.broadcast %24 : vector<128x1xf32> to vector<128x128xf32>
    %28 = arith.subf %20, %27 : vector<128x128xf32>
    %29 = math.exp %28 : vector<128x128xf32>
    %c0_13 = arith.constant 0 : index
    %c0_14 = arith.constant 0 : index
    %30 = vector.load %arg11[%c0_13, %c0_14] : memref<128x1xf32, #tpu.memory_space<vmem>>, vector<128x1xf32>
    %31 = arith.mulf %26, %30 : vector<128x1xf32>
    %cst_15 = arith.constant dense<0.000000e+00> : vector<128xf32>
    %32 = vector.multi_reduction <add>, %29, %cst_15 [1] : vector<128x128xf32> to vector<128xf32>
    %33 = vector.shape_cast %32 : vector<128xf32> to vector<128x1xf32>
    %34 = arith.addf %31, %33 : vector<128x1xf32>
    %c0_16 = arith.constant 0 : index
    %c0_17 = arith.constant 0 : index
    %35 = vector.load %arg11[%c0_16, %c0_17] : memref<128x1xf32, #tpu.memory_space<vmem>>, vector<128x1xf32>
    tpu.vector_store %arg11[%c0_16, %c0_17], %34 {strides = array<i32>} : memref<128x1xf32, #tpu.memory_space<vmem>>, vector<128x1xf32>,
    %c0_18 = arith.constant 0 : index
    %c0_19 = arith.constant 0 : index
    %36 = vector.load %arg12[%c0_18, %c0_19] : memref<128x128xf32, #tpu.memory_space<vmem>>, vector<128x128xf32>
    %37 = vector.broadcast %26 : vector<128x1xf32> to vector<128x128xf32>
    %38 = arith.mulf %37, %36 : vector<128x128xf32>
    %cst_20 = arith.constant dense<0.000000e+00> : vector<128x128xf32>
    %39 = tpu.matmul %29, %10, %cst_20 {dimension_numbers = #tpu.dot_dimension_numbers<[1], [0], [0], [1], [0, 0, 1, 1], [], []>} : vector<128x128xf32>, vector<128x128xf32>, vector<128x128xf32> -> vector<128x128xf32>
    %40 = arith.addf %38, %39 : vector<128x128xf32>
    %c0_21 = arith.constant 0 : index
    %c0_22 = arith.constant 0 : index
    %41 = vector.load %arg12[%c0_21, %c0_22] : memref<128x128xf32, #tpu.memory_space<vmem>>, vector<128x128xf32>
    tpu.vector_store %arg12[%c0_21, %c0_22], %40 {strides = array<i32>} : memref<128x128xf32, #tpu.memory_space<vmem>>, vector<128x128xf32>,
    %c0_23 = arith.constant 0 : index
    %c0_24 = arith.constant 0 : index
    %42 = vector.load %arg10[%c0_23, %c0_24] : memref<128x1xf32, #tpu.memory_space<vmem>>, vector<128x1xf32>
    tpu.vector_store %arg10[%c0_23, %c0_24], %24 {strides = array<i32>} : memref<128x1xf32, #tpu.memory_space<vmem>>, vector<128x1xf32>,
    %c0_i32_25 = arith.constant 0 : i32
    %43 = arith.cmpi eq, %arg1, %c0_i32_25 : i32
    %44 = arith.extui %43 : i1 to i32
    %c0_i32_26 = arith.constant 0 : i32
    %45 = arith.cmpi ne, %44, %c0_i32_26 : i32
    scf.if %45 {
      %c0_27 = arith.constant 0 : index
      %c0_28 = arith.constant 0 : index
      %46 = vector.load %arg11[%c0_27, %c0_28] : memref<128x1xf32, #tpu.memory_space<vmem>>, vector<128x1xf32>
      %47 = tpu.reciprocal %46 {approx = true} : vector<128x1xf32> -> vector<128x1xf32>
      %48 = arith.mulf %46, %47 : vector<128x1xf32>
      %cst_29 = arith.constant 2.000000e+00 : f32
      %49 = vector.broadcast %cst_29 : f32 to vector<128x1xf32>
      %50 = arith.subf %49, %48 : vector<128x1xf32>
      %51 = arith.mulf %47, %50 : vector<128x1xf32>
      %c0_30 = arith.constant 0 : index
      %c0_31 = arith.constant 0 : index
      %52 = vector.load %arg12[%c0_30, %c0_31] : memref<128x128xf32, #tpu.memory_space<vmem>>, vector<128x128xf32>
      %53 = vector.broadcast %51 : vector<128x1xf32> to vector<128x128xf32>
      %54 = arith.mulf %52, %53 : vector<128x128xf32>
      %c0_32 = arith.constant 0 : index
      %c0_33 = arith.constant 0 : index
      %55 = vector.load %arg8[%c0_32, %c0_33] : memref<128x128xf32, #tpu.memory_space<vmem>>, vector<128x128xf32>
      tpu.vector_store %arg8[%c0_32, %c0_33], %54 {strides = array<i32>} : memref<128x128xf32, #tpu.memory_space<vmem>>, vector<128x128xf32>,
    } else {
    }
    return
  }
  func.func @transform_0(%arg0: i32, %arg1: i32) -> (i32, i32) {
    %c0_i32 = arith.constant 0 : i32
    %c0_i32_0 = arith.constant 0 : i32
    return %arg0, %c0_i32 : i32, i32
  }
  func.func @transform_1(%arg0: i32, %arg1: i32) -> (i32, i32) {
    %c0_i32 = arith.constant 0 : i32
    %c0_i32_0 = arith.constant 0 : i32
    return %arg1, %c0_i32 : i32, i32
  }
  func.func @transform_2(%arg0: i32, %arg1: i32) -> (i32, i32) {
    %c0_i32 = arith.constant 0 : i32
    %c0_i32_0 = arith.constant 0 : i32
    %c0_i32_1 = arith.constant 0 : i32
    return %c0_i32, %c0_i32_0 : i32, i32
  }
  func.func @transform_3(%arg0: i32, %arg1: i32) -> (i32, i32) {
    %c0_i32 = arith.constant 0 : i32
    %c0_i32_0 = arith.constant 0 : i32
    %c0_i32_1 = arith.constant 0 : i32
    return %c0_i32, %c0_i32_0 : i32, i32
  }
  func.func @transform_4(%arg0: i32, %arg1: i32) -> (i32, i32) {
    %c0_i32 = arith.constant 0 : i32
    %c0_i32_0 = arith.constant 0 : i32
    %c0_i32_1 = arith.constant 0 : i32
    return %c0_i32, %c0_i32_0 : i32, i32
  }
  func.func @transform_5(%arg0: i32, %arg1: i32) -> (i32, i32) {
    %c0_i32 = arith.constant 0 : i32
    %c0_i32_0 = arith.constant 0 : i32
    %c0_i32_1 = arith.constant 0 : i32
    return %c0_i32, %c0_i32_0 : i32, i32
  }
  func.func @transform_6(%arg0: i32, %arg1: i32) -> (i32, i32) {
    %c0_i32 = arith.constant 0 : i32
    %c0_i32_0 = arith.constant 0 : i32
    return %arg0, %c0_i32 : i32, i32
  }
}

</mosaic_0001>

<llo_original>
// kernel: tpu_custom_call.1
$region0: #{tpu_custom_call.1}
  #allocation0 [shape = 'u32[]', space=smem, size = 0x4, offset = 0x4, fixed_abs, tag = 'smem constant byte address 0x4 - core index']
  #allocation1 [shape = 'u32[72,128]{1,0:T(1,128)}', space=vmem, size = 0x9000, scoped, tag = 'internal scratch']
  #allocation2 [shape = 'f32[128,128]{1,0:T(8,128)}', space=vmem, size = 0x10000, scoped, tag = 'scratch operand']
  #allocation3 [shape = 'f32[128,1]{1,0:T(8,128)}', space=vmem, size = 0x10000, scoped, tag = 'scratch operand']
  #allocation4 [shape = 'f32[128,1]{1,0:T(8,128)}', space=vmem, size = 0x10000, scoped, tag = 'scratch operand']
  #allocation5 [shape = 'f32[128,128]{1,0:T(8,128)}', space=vmem, size = 0x10000, scoped, tag = 'scratch operand']
  %s0 = inlined_call_operand.hbm [shape: f32[128,128], index: 0, kind: input, shape index: {}]
  %s1 = inlined_call_operand.hbm [shape: f32[128,128], index: 1, kind: input, shape index: {}]
  %s2 = inlined_call_operand.hbm [shape: f32[128,128], index: 2, kind: input, shape index: {}]
  %s3 = inlined_call_operand.vmem [shape: f32[1,128], index: 3, kind: input, shape index: {}]
  %s4 = inlined_call_operand.hbm [shape: f32[128,256], index: 4, kind: input, shape index: {}]
  %s5 = inlined_call_operand.vmem [shape: f32[1,256], index: 5, kind: input, shape index: {}]
  %s6 = inlined_call_operand.hbm [shape: f32[128,128], index: 6, kind: output, shape index: {}]
  %s7 = sld [smem:[#allocation0]]
  $region58: #{tpu_custom_call.1} parent=0
    _
  %s9 = ssub.s32 1, %s7
  %s10 = scalar_select 0, %s9, %s7
  $region1: #{tpu_custom_call.1} parent=0
    #allocation6 [shape = 'u8[65536]{0}', space=vmem, size = 0x10000, scoped, tag = 'input window, operand 0, single buffered']
    #allocation7 [shape = 's32[1]{0}', space=sflag, size = 0x4, scoped, tag = 'scoped memory for tpu_custom_call.1']
    #allocation8 [shape = 's32[1]{0}', space=sflag, size = 0x4, scoped, tag = 'scoped memory for tpu_custom_call.1']
    #allocation9 [shape = 'u8[65536]{0}', space=vmem, size = 0x10000, scoped, tag = 'input window, operand 1, single buffered']
    #allocation10 [shape = 's32[1]{0}', space=sflag, size = 0x4, scoped, tag = 'scoped memory for tpu_custom_call.1']
    #allocation11 [shape = 'u8[65536]{0}', space=vmem, size = 0x10000, scoped, tag = 'input window, operand 2, single buffered']
    #allocation12 [shape = 'u8[131072]{0}', space=vmem, size = 0x20000, scoped, tag = 'input window, operand 4, single buffered']
    #allocation13 [shape = 's32[1]{0}', space=sflag, size = 0x4, scoped, tag = 'scoped memory for tpu_custom_call.1']
    #allocation14 [shape = 'u8[65536]{0}', space=vmem, size = 0x10000, scoped, tag = 'output window, operand 0, single buffered']
    %11 = vsyncpa [#allocation7], 0
    %12 = vsyncpa [#allocation10], 0
    %13 = vsyncpa [#allocation13], 0
    %14 = vsyncpa [#allocation8], 0
    // Predicated region
    $region2: #{tpu_custom_call.1} parent=1 // pred_check
      _
    $region3: #{tpu_custom_call.1} parent=1 // pred_check_branch
      %16 = sbr.rel (0) target = $region5
    $region4: #{tpu_custom_call.1} parent=1 // pred_region
      %18 = vsyncadd [#allocation7], 0
      %s19 = sshll.u32 %s0, 4
      %s20 = int_to_ptr.hbm [resolvable:$true] %s19
      %s21 = sshll.u32 [#allocation6], 4
      %s22 = int_to_ptr.vmem [resolvable:$true] %s21
      %27 = dma.hbm_to_vmem [thread:$0]  %s20, 2048, %s22, [#allocation7], 128, 128, 8
    $region5: #{tpu_custom_call.1} parent=1 // pred_fallthru
      _
    // Predicated region
    $region6: #{tpu_custom_call.1} parent=1 // pred_check
      _
    $region7: #{tpu_custom_call.1} parent=1 // pred_check_branch
      %29 = sbr.rel (0) target = $region9
    $region8: #{tpu_custom_call.1} parent=1 // pred_region
      %31 = vsyncadd [#allocation10], 0
      %s32 = sshll.u32 %s1, 4
      %s33 = int_to_ptr.hbm [resolvable:$true] %s32
      %s34 = sshll.u32 [#allocation9], 4
      %s35 = int_to_ptr.vmem [resolvable:$true] %s34
      %40 = dma.hbm_to_vmem [thread:$0]  %s33, 2048, %s35, [#allocation10], 128, 128, 8
    $region9: #{tpu_custom_call.1} parent=1 // pred_fallthru
      _
    // Predicated region
    $region10: #{tpu_custom_call.1} parent=1 // pred_check
      _
    $region11: #{tpu_custom_call.1} parent=1 // pred_check_branch
      %42 = sbr.rel (0) target = $region13
    $region12: #{tpu_custom_call.1} parent=1 // pred_region
      %44 = vsyncadd [#allocation10], 0
      %s45 = sshll.u32 %s2, 4
      %s46 = int_to_ptr.hbm [resolvable:$true] %s45
      %s47 = sshll.u32 [#allocation11], 4
      %s48 = int_to_ptr.vmem [resolvable:$true] %s47
      %53 = dma.hbm_to_vmem [thread:$0]  %s46, 2048, %s48, [#allocation10], 128, 128, 8
    $region13: #{tpu_custom_call.1} parent=1 // pred_fallthru
      _
    // Predicated region
    $region14: #{tpu_custom_call.1} parent=1 // pred_check
      _
    $region15: #{tpu_custom_call.1} parent=1 // pred_check_branch
      %55 = sbr.rel (0) target = $region17
    $region16: #{tpu_custom_call.1} parent=1 // pred_region
      _
    $region17: #{tpu_custom_call.1} parent=1 // pred_fallthru
      _
    // Predicated region
    $region18: #{tpu_custom_call.1} parent=1 // pred_check
      _
    $region19: #{tpu_custom_call.1} parent=1 // pred_check_branch
      %57 = sbr.rel (0) target = $region21
    $region20: #{tpu_custom_call.1} parent=1 // pred_region
      %59 = vsyncadd [#allocation13], 0
      %s60 = sshll.u32 %s4, 4
      %s61 = int_to_ptr.hbm [resolvable:$true] %s60
      %s62 = sshll.u32 [#allocation12], 4
      %s63 = int_to_ptr.vmem [resolvable:$true] %s62
      %68 = dma.hbm_to_vmem [thread:$0]  %s61, 4096, %s63, [#allocation13], 256, 256, 16
    $region21: #{tpu_custom_call.1} parent=1 // pred_fallthru
      _
    // Predicated region
    $region22: #{tpu_custom_call.1} parent=1 // pred_check
      _
    $region23: #{tpu_custom_call.1} parent=1 // pred_check_branch
      %70 = sbr.rel (0) target = $region25
    $region24: #{tpu_custom_call.1} parent=1 // pred_region
      _
    $region25: #{tpu_custom_call.1} parent=1 // pred_fallthru
      _
    // Predicated region
    $region26: #{tpu_custom_call.1} parent=1 // pred_check
      _
    $region27: #{tpu_custom_call.1} parent=1 // pred_check_branch
      %72 = sbr.rel (0) target = $region29
    $region28: #{tpu_custom_call.1} parent=1 // pred_region
      %74 = dma.done [#allocation7], 2048
    $region29: #{tpu_custom_call.1} parent=1 // pred_fallthru
      _
    // Predicated region
    $region30: #{tpu_custom_call.1} parent=1 // pred_check
      _
    $region31: #{tpu_custom_call.1} parent=1 // pred_check_branch
      %76 = sbr.rel (0) target = $region33
    $region32: #{tpu_custom_call.1} parent=1 // pred_region
      %78 = dma.done [#allocation10], 2048
    $region33: #{tpu_custom_call.1} parent=1 // pred_fallthru
      _
    // Predicated region
    $region34: #{tpu_custom_call.1} parent=1 // pred_check
      _
    $region35: #{tpu_custom_call.1} parent=1 // pred_check_branch
      %80 = sbr.rel (0) target = $region37
    $region36: #{tpu_custom_call.1} parent=1 // pred_region
      %82 = dma.done [#allocation10], 2048
    $region37: #{tpu_custom_call.1} parent=1 // pred_fallthru
      _
    // Predicated region
    $region38: #{tpu_custom_call.1} parent=1 // pred_check
      _
    $region39: #{tpu_custom_call.1} parent=1 // pred_check_branch
      %84 = sbr.rel (0) target = $region41
    $region40: #{tpu_custom_call.1} parent=1 // pred_region
      %86 = dma.done [#allocation13], 4096
    $region41: #{tpu_custom_call.1} parent=1 // pred_fallthru
      _
    %p87 = scmp.eq.s32.totalorder 0, 0
    // Predicated region
    $region42: #{tpu_custom_call.1} parent=1 // pred_check
      %p88 = pneg %p87
    $region43: #{tpu_custom_call.1} parent=1 // pred_check_branch
      %90 = sbr.rel (%p88) target = $region45
    $region44: #{tpu_custom_call.1} parent=1 // pred_region
      %v91 = vld [vmem:[#allocation6] sm:$0xff]
      %v92 = vld [vmem:[#allocation6 + $0x8] sm:$0xff]
      %v93 = vld [vmem:[#allocation6 + $0x10] sm:$0xff]
      %v94 = vld [vmem:[#allocation6 + $0x18] sm:$0xff]
      %v95 = vld [vmem:[#allocation6 + $0x20] sm:$0xff]
      %v96 = vld [vmem:[#allocation6 + $0x28] sm:$0xff]
      %v97 = vld [vmem:[#allocation6 + $0x30] sm:$0xff]
      %v98 = vld [vmem:[#allocation6 + $0x38] sm:$0xff]
      %v99 = vld [vmem:[#allocation6 + $0x40] sm:$0xff]
      %v100 = vld [vmem:[#allocation6 + $0x48] sm:$0xff]
      %v101 = vld [vmem:[#allocation6 + $0x50] sm:$0xff]
      %v102 = vld [vmem:[#allocation6 + $0x58] sm:$0xff]
      %v103 = vld [vmem:[#allocation6 + $0x60] sm:$0xff]
      %v104 = vld [vmem:[#allocation6 + $0x68] sm:$0xff]
      %v105 = vld [vmem:[#allocation6 + $0x70] sm:$0xff]
      %v106 = vld [vmem:[#allocation6 + $0x78] sm:$0xff]
      %v107 = vld [vmem:[#allocation11] sm:$0xff]
      %v108 = vld [vmem:[#allocation11 + $0x8] sm:$0xff]
      %v109 = vld [vmem:[#allocation11 + $0x10] sm:$0xff]
      %v110 = vld [vmem:[#allocation11 + $0x18] sm:$0xff]
      %v111 = vld [vmem:[#allocation11 + $0x20] sm:$0xff]
      %v112 = vld [vmem:[#allocation11 + $0x28] sm:$0xff]
      %v113 = vld [vmem:[#allocation11 + $0x30] sm:$0xff]
      %v114 = vld [vmem:[#allocation11 + $0x38] sm:$0xff]
      %v115 = vld [vmem:[#allocation11 + $0x40] sm:$0xff]
      %v116 = vld [vmem:[#allocation11 + $0x48] sm:$0xff]
      %v117 = vld [vmem:[#allocation11 + $0x50] sm:$0xff]
      %v118 = vld [vmem:[#allocation11 + $0x58] sm:$0xff]
      %v119 = vld [vmem:[#allocation11 + $0x60] sm:$0xff]
      %v120 = vld [vmem:[#allocation11 + $0x68] sm:$0xff]
      %v121 = vld [vmem:[#allocation11 + $0x70] sm:$0xff]
      %v122 = vld [vmem:[#allocation11 + $0x78] sm:$0xff]
      %v123 = vld [vmem:[%s3] sm:$0x1]
      %v125 = vperm.slane %v123, 0
      %127 = vmatpush.msra.mxu0 %v122
      %128 = vmatpush.msra.mxu0 %v121
      %129 = vmatpush.msra.mxu0 %v120
      %130 = vmatpush.msra.mxu0 %v119
      %131 = vmatpush.msra.mxu0 %v118
      %132 = vmatpush.msra.mxu0 %v117
      %133 = vmatpush.msra.mxu0 %v116
      %134 = vmatpush.msra.mxu0 %v115
      %135 = vmatpush.msra.mxu0 %v114
      %136 = vmatpush.msra.mxu0 %v113
      %137 = vmatpush.msra.mxu0 %v112
      %138 = vmatpush.msra.mxu0 %v111
      %139 = vmatpush.msra.mxu0 %v110
      %140 = vmatpush.msra.mxu0 %v109
      %141 = vmatpush.msra.mxu0 %v108
      %142 = vmatpush.msra.mxu0 %v107
      %143 = vmatmul.f32.gmra.mxu0 %v91
      %v144 = vpop.f32.mrf.mxu0
      %v145 = vadd.f32 %v125, %v144
      %146 = vmatmul.f32.gmra.mxu0 %v92
      %v147 = vpop.f32.mrf.mxu0
      %v148 = vadd.f32 %v125, %v147
      %149 = vmatmul.f32.gmra.mxu0 %v93
      %v150 = vpop.f32.mrf.mxu0
      %v151 = vadd.f32 %v125, %v150
      %152 = vmatmul.f32.gmra.mxu0 %v94
      %v153 = vpop.f32.mrf.mxu0
      %v154 = vadd.f32 %v125, %v153
      %155 = vmatmul.f32.gmra.mxu0 %v95
      %v156 = vpop.f32.mrf.mxu0
      %v157 = vadd.f32 %v125, %v156
      %158 = vmatmul.f32.gmra.mxu0 %v96
      %v159 = vpop.f32.mrf.mxu0
      %v160 = vadd.f32 %v125, %v159
      %161 = vmatmul.f32.gmra.mxu0 %v97
      %v162 = vpop.f32.mrf.mxu0
      %v163 = vadd.f32 %v125, %v162
      %164 = vmatmul.f32.gmra.mxu0 %v98
      %v165 = vpop.f32.mrf.mxu0
      %v166 = vadd.f32 %v125, %v165
      %167 = vmatmul.f32.gmra.mxu0 %v99
      %v168 = vpop.f32.mrf.mxu0
      %v169 = vadd.f32 %v125, %v168
      %170 = vmatmul.f32.gmra.mxu0 %v100
      %v171 = vpop.f32.mrf.mxu0
      %v172 = vadd.f32 %v125, %v171
      %173 = vmatmul.f32.gmra.mxu0 %v101
      %v174 = vpop.f32.mrf.mxu0
      %v175 = vadd.f32 %v125, %v174
      %176 = vmatmul.f32.gmra.mxu0 %v102
      %v177 = vpop.f32.mrf.mxu0
      %v178 = vadd.f32 %v125, %v177
      %179 = vmatmul.f32.gmra.mxu0 %v103
      %v180 = vpop.f32.mrf.mxu0
      %v181 = vadd.f32 %v125, %v180
      %182 = vmatmul.f32.gmra.mxu0 %v104
      %v183 = vpop.f32.mrf.mxu0
      %v184 = vadd.f32 %v125, %v183
      %185 = vmatmul.f32.gmra.mxu0 %v105
      %v186 = vpop.f32.mrf.mxu0
      %v187 = vadd.f32 %v125, %v186
      %188 = vmatmul.f32.gmra.mxu0 %v106
      %v189 = vpop.f32.mrf.mxu0
      %v190 = vadd.f32 %v125, %v189
      %191 = vdwg.mxu0
      %192 = vst [vmem:[#allocation2] sm:$0xff] %v145
      %193 = vst [vmem:[#allocation2 + $0x8] sm:$0xff] %v148
      %194 = vst [vmem:[#allocation2 + $0x10] sm:$0xff] %v151
      %195 = vst [vmem:[#allocation2 + $0x18] sm:$0xff] %v154
      %196 = vst [vmem:[#allocation2 + $0x20] sm:$0xff] %v157
      %197 = vst [vmem:[#allocation2 + $0x28] sm:$0xff] %v160
      %198 = vst [vmem:[#allocation2 + $0x30] sm:$0xff] %v163
      %199 = vst [vmem:[#allocation2 + $0x38] sm:$0xff] %v166
      %200 = vst [vmem:[#allocation2 + $0x40] sm:$0xff] %v169
      %201 = vst [vmem:[#allocation2 + $0x48] sm:$0xff] %v172
      %202 = vst [vmem:[#allocation2 + $0x50] sm:$0xff] %v175
      %203 = vst [vmem:[#allocation2 + $0x58] sm:$0xff] %v178
      %204 = vst [vmem:[#allocation2 + $0x60] sm:$0xff] %v181
      %205 = vst [vmem:[#allocation2 + $0x68] sm:$0xff] %v184
      %206 = vst [vmem:[#allocation2 + $0x70] sm:$0xff] %v187
      %207 = vst [vmem:[#allocation2 + $0x78] sm:$0xff] %v190
      %vm208 = vcmask 7168
      %209 = vst.msk [vmem:[#allocation3] sm:$0xff] %vm208, -1e+30
      %210 = vst.msk [vmem:[#allocation3 + $0x8] sm:$0xff] %vm208, -1e+30
      %211 = vst.msk [vmem:[#allocation3 + $0x10] sm:$0xff] %vm208, -1e+30
      %212 = vst.msk [vmem:[#allocation3 + $0x18] sm:$0xff] %vm208, -1e+30
      %213 = vst.msk [vmem:[#allocation3 + $0x20] sm:$0xff] %vm208, -1e+30
      %214 = vst.msk [vmem:[#allocation3 + $0x28] sm:$0xff] %vm208, -1e+30
      %215 = vst.msk [vmem:[#allocation3 + $0x30] sm:$0xff] %vm208, -1e+30
      %216 = vst.msk [vmem:[#allocation3 + $0x38] sm:$0xff] %vm208, -1e+30
      %217 = vst.msk [vmem:[#allocation3 + $0x40] sm:$0xff] %vm208, -1e+30
      %218 = vst.msk [vmem:[#allocation3 + $0x48] sm:$0xff] %vm208, -1e+30
      %219 = vst.msk [vmem:[#allocation3 + $0x50] sm:$0xff] %vm208, -1e+30
      %220 = vst.msk [vmem:[#allocation3 + $0x58] sm:$0xff] %vm208, -1e+30
      %221 = vst.msk [vmem:[#allocation3 + $0x60] sm:$0xff] %vm208, -1e+30
      %222 = vst.msk [vmem:[#allocation3 + $0x68] sm:$0xff] %vm208, -1e+30
      %223 = vst.msk [vmem:[#allocation3 + $0x70] sm:$0xff] %vm208, -1e+30
      %224 = vst.msk [vmem:[#allocation3 + $0x78] sm:$0xff] %vm208, -1e+30
      %225 = vst.msk [vmem:[#allocation4] sm:$0xff] %vm208, 0.0
      %226 = vst.msk [vmem:[#allocation4 + $0x8] sm:$0xff] %vm208, 0.0
      %227 = vst.msk [vmem:[#allocation4 + $0x10] sm:$0xff] %vm208, 0.0
      %228 = vst.msk [vmem:[#allocation4 + $0x18] sm:$0xff] %vm208, 0.0
      %229 = vst.msk [vmem:[#allocation4 + $0x20] sm:$0xff] %vm208, 0.0
      %230 = vst.msk [vmem:[#allocation4 + $0x28] sm:$0xff] %vm208, 0.0
      %231 = vst.msk [vmem:[#allocation4 + $0x30] sm:$0xff] %vm208, 0.0
      %232 = vst.msk [vmem:[#allocation4 + $0x38] sm:$0xff] %vm208, 0.0
      %233 = vst.msk [vmem:[#allocation4 + $0x40] sm:$0xff] %vm208, 0.0
      %234 = vst.msk [vmem:[#allocation4 + $0x48] sm:$0xff] %vm208, 0.0
      %235 = vst.msk [vmem:[#allocation4 + $0x50] sm:$0xff] %vm208, 0.0
      %236 = vst.msk [vmem:[#allocation4 + $0x58] sm:$0xff] %vm208, 0.0
      %237 = vst.msk [vmem:[#allocation4 + $0x60] sm:$0xff] %vm208, 0.0
      %238 = vst.msk [vmem:[#allocation4 + $0x68] sm:$0xff] %vm208, 0.0
      %239 = vst.msk [vmem:[#allocation4 + $0x70] sm:$0xff] %vm208, 0.0
      %240 = vst.msk [vmem:[#allocation4 + $0x78] sm:$0xff] %vm208, 0.0
      %241 = vst [vmem:[#allocation5] sm:$0xff] 0.0
      %242 = vst [vmem:[#allocation5 + $0x8] sm:$0xff] 0.0
      %243 = vst [vmem:[#allocation5 + $0x10] sm:$0xff] 0.0
      %244 = vst [vmem:[#allocation5 + $0x18] sm:$0xff] 0.0
      %245 = vst [vmem:[#allocation5 + $0x20] sm:$0xff] 0.0
      %246 = vst [vmem:[#allocation5 + $0x28] sm:$0xff] 0.0
      %247 = vst [vmem:[#allocation5 + $0x30] sm:$0xff] 0.0
      %248 = vst [vmem:[#allocation5 + $0x38] sm:$0xff] 0.0
      %249 = vst [vmem:[#allocation5 + $0x40] sm:$0xff] 0.0
      %250 = vst [vmem:[#allocation5 + $0x48] sm:$0xff] 0.0
      %251 = vst [vmem:[#allocation5 + $0x50] sm:$0xff] 0.0
      %252 = vst [vmem:[#allocation5 + $0x58] sm:$0xff] 0.0
      %253 = vst [vmem:[#allocation5 + $0x60] sm:$0xff] 0.0
      %254 = vst [vmem:[#allocation5 + $0x68] sm:$0xff] 0.0
      %255 = vst [vmem:[#allocation5 + $0x70] sm:$0xff] 0.0
      %256 = vst [vmem:[#allocation5 + $0x78] sm:$0xff] 0.0
    $region45: #{tpu_custom_call.1} parent=1 // pred_fallthru
      _
    %v257 = vld [vmem:[#allocation9] sm:$0xff]
    %v258 = vld [vmem:[#allocation9 + $0x8] sm:$0xff]
    %v259 = vld [vmem:[#allocation9 + $0x10] sm:$0xff]
    %v260 = vld [vmem:[#allocation9 + $0x18] sm:$0xff]
    %v261 = vld [vmem:[#allocation9 + $0x20] sm:$0xff]
    %v262 = vld [vmem:[#allocation9 + $0x28] sm:$0xff]
    %v263 = vld [vmem:[#allocation9 + $0x30] sm:$0xff]
    %v264 = vld [vmem:[#allocation9 + $0x38] sm:$0xff]
    %v265 = vld [vmem:[#allocation9 + $0x40] sm:$0xff]
    %v266 = vld [vmem:[#allocation9 + $0x48] sm:$0xff]
    %v267 = vld [vmem:[#allocation9 + $0x50] sm:$0xff]
    %v268 = vld [vmem:[#allocation9 + $0x58] sm:$0xff]
    %v269 = vld [vmem:[#allocation9 + $0x60] sm:$0xff]
    %v270 = vld [vmem:[#allocation9 + $0x68] sm:$0xff]
    %v271 = vld [vmem:[#allocation9 + $0x70] sm:$0xff]
    %v272 = vld [vmem:[#allocation9 + $0x78] sm:$0xff]
    %v273 = vld [vmem:[#allocation12] sm:$0xff]
    %v274 = vld [vmem:[#allocation12 + $0x8] sm:$0xff]
    %v275 = vld [vmem:[#allocation12 + $0x10] sm:$0xff]
    %v276 = vld [vmem:[#allocation12 + $0x18] sm:$0xff]
    %v277 = vld [vmem:[#allocation12 + $0x20] sm:$0xff]
    %v278 = vld [vmem:[#allocation12 + $0x28] sm:$0xff]
    %v279 = vld [vmem:[#allocation12 + $0x30] sm:$0xff]
    %v280 = vld [vmem:[#allocation12 + $0x38] sm:$0xff]
    %v281 = vld [vmem:[#allocation12 + $0x40] sm:$0xff]
    %v282 = vld [vmem:[#allocation12 + $0x48] sm:$0xff]
    %v283 = vld [vmem:[#allocation12 + $0x50] sm:$0xff]
    %v284 = vld [vmem:[#allocation12 + $0x58] sm:$0xff]
    %v285 = vld [vmem:[#allocation12 + $0x60] sm:$0xff]
    %v286 = vld [vmem:[#allocation12 + $0x68] sm:$0xff]
    %v287 = vld [vmem:[#allocation12 + $0x70] sm:$0xff]
    %v288 = vld [vmem:[#allocation12 + $0x78] sm:$0xff]
    %v289 = vld [vmem:[#allocation12 + $0x80] sm:$0xff]
    %v290 = vld [vmem:[#allocation12 + $0x88] sm:$0xff]
    %v291 = vld [vmem:[#allocation12 + $0x90] sm:$0xff]
    %v292 = vld [vmem:[#allocation12 + $0x98] sm:$0xff]
    %v293 = vld [vmem:[#allocation12 + $0xa0] sm:$0xff]
    %v294 = vld [vmem:[#allocation12 + $0xa8] sm:$0xff]
    %v295 = vld [vmem:[#allocation12 + $0xb0] sm:$0xff]
    %v296 = vld [vmem:[#allocation12 + $0xb8] sm:$0xff]
    %v297 = vld [vmem:[#allocation12 + $0xc0] sm:$0xff]
    %v298 = vld [vmem:[#allocation12 + $0xc8] sm:$0xff]
    %v299 = vld [vmem:[#allocation12 + $0xd0] sm:$0xff]
    %v300 = vld [vmem:[#allocation12 + $0xd8] sm:$0xff]
    %v301 = vld [vmem:[#allocation12 + $0xe0] sm:$0xff]
    %v302 = vld [vmem:[#allocation12 + $0xe8] sm:$0xff]
    %v303 = vld [vmem:[#allocation12 + $0xf0] sm:$0xff]
    %v304 = vld [vmem:[#allocation12 + $0xf8] sm:$0xff]
    %v305 = vld [vmem:[%s5] sm:$0x3]
    %v307 = vperm.slane %v305, 0
    %v308 = vperm.slane %v305, 1
    %311 = vmatpush.msra.mxu0 %v303
    %312 = vmatpush.msra.mxu0 %v301
    %313 = vmatpush.msra.mxu0 %v299
    %314 = vmatpush.msra.mxu0 %v297
    %315 = vmatpush.msra.mxu0 %v295
    %316 = vmatpush.msra.mxu0 %v293
    %317 = vmatpush.msra.mxu0 %v291
    %318 = vmatpush.msra.mxu0 %v289
    %319 = vmatpush.msra.mxu0 %v287
    %320 = vmatpush.msra.mxu0 %v285
    %321 = vmatpush.msra.mxu0 %v283
    %322 = vmatpush.msra.mxu0 %v281
    %323 = vmatpush.msra.mxu0 %v279
    %324 = vmatpush.msra.mxu0 %v277
    %325 = vmatpush.msra.mxu0 %v275
    %326 = vmatpush.msra.mxu0 %v273
    %327 = vmatmul.f32.gmra.mxu0 %v257
    %v328 = vpop.f32.mrf.mxu0
    %v329 = vadd.f32 %v307, %v328
    %330 = vmatmul.f32.gmra.mxu0 %v258
    %v331 = vpop.f32.mrf.mxu0
    %v332 = vadd.f32 %v307, %v331
    %333 = vmatmul.f32.gmra.mxu0 %v259
    %v334 = vpop.f32.mrf.mxu0
    %v335 = vadd.f32 %v307, %v334
    %336 = vmatmul.f32.gmra.mxu0 %v260
    %v337 = vpop.f32.mrf.mxu0
    %v338 = vadd.f32 %v307, %v337
    %339 = vmatmul.f32.gmra.mxu0 %v261
    %v340 = vpop.f32.mrf.mxu0
    %v341 = vadd.f32 %v307, %v340
    %342 = vmatmul.f32.gmra.mxu0 %v262
    %v343 = vpop.f32.mrf.mxu0
    %v344 = vadd.f32 %v307, %v343
    %345 = vmatmul.f32.gmra.mxu0 %v263
    %v346 = vpop.f32.mrf.mxu0
    %v347 = vadd.f32 %v307, %v346
    %348 = vmatmul.f32.gmra.mxu0 %v264
    %v349 = vpop.f32.mrf.mxu0
    %v350 = vadd.f32 %v307, %v349
    %351 = vmatmul.f32.gmra.mxu0 %v265
    %v352 = vpop.f32.mrf.mxu0
    %v353 = vadd.f32 %v307, %v352
    %354 = vmatmul.f32.gmra.mxu0 %v266
    %v355 = vpop.f32.mrf.mxu0
    %v356 = vadd.f32 %v307, %v355
    %357 = vmatmul.f32.gmra.mxu0 %v267
    %v358 = vpop.f32.mrf.mxu0
    %v359 = vadd.f32 %v307, %v358
    %360 = vmatmul.f32.gmra.mxu0 %v268
    %v361 = vpop.f32.mrf.mxu0
    %v362 = vadd.f32 %v307, %v361
    %363 = vmatmul.f32.gmra.mxu0 %v269
    %v364 = vpop.f32.mrf.mxu0
    %v365 = vadd.f32 %v307, %v364
    %366 = vmatmul.f32.gmra.mxu0 %v270
    %v367 = vpop.f32.mrf.mxu0
    %v368 = vadd.f32 %v307, %v367
    %369 = vmatmul.f32.gmra.mxu0 %v271
    %v370 = vpop.f32.mrf.mxu0
    %v371 = vadd.f32 %v307, %v370
    %372 = vmatmul.f32.gmra.mxu0 %v272
    %v373 = vpop.f32.mrf.mxu0
    %v374 = vadd.f32 %v307, %v373
    %375 = vdwg.mxu0
    %376 = vmatpush.msra.mxu0 %v304
    %377 = vmatpush.msra.mxu0 %v302
    %378 = vmatpush.msra.mxu0 %v300
    %379 = vmatpush.msra.mxu0 %v298
    %380 = vmatpush.msra.mxu0 %v296
    %381 = vmatpush.msra.mxu0 %v294
    %382 = vmatpush.msra.mxu0 %v292
    %383 = vmatpush.msra.mxu0 %v290
    %384 = vmatpush.msra.mxu0 %v288
    %385 = vmatpush.msra.mxu0 %v286
    %386 = vmatpush.msra.mxu0 %v284
    %387 = vmatpush.msra.mxu0 %v282
    %388 = vmatpush.msra.mxu0 %v280
    %389 = vmatpush.msra.mxu0 %v278
    %390 = vmatpush.msra.mxu0 %v276
    %391 = vmatpush.msra.mxu0 %v274
    %392 = vmatmul.f32.gmra.mxu0 %v257
    %v393 = vpop.f32.mrf.mxu0
    %v394 = vadd.f32 %v308, %v393
    %395 = vmatmul.f32.gmra.mxu0 %v258
    %v396 = vpop.f32.mrf.mxu0
    %v397 = vadd.f32 %v308, %v396
    %398 = vmatmul.f32.gmra.mxu0 %v259
    %v399 = vpop.f32.mrf.mxu0
    %v400 = vadd.f32 %v308, %v399
    %401 = vmatmul.f32.gmra.mxu0 %v260
    %v402 = vpop.f32.mrf.mxu0
    %v403 = vadd.f32 %v308, %v402
    %404 = vmatmul.f32.gmra.mxu0 %v261
    %v405 = vpop.f32.mrf.mxu0
    %v406 = vadd.f32 %v308, %v405
    %407 = vmatmul.f32.gmra.mxu0 %v262
    %v408 = vpop.f32.mrf.mxu0
    %v409 = vadd.f32 %v308, %v408
    %410 = vmatmul.f32.gmra.mxu0 %v263
    %v411 = vpop.f32.mrf.mxu0
    %v412 = vadd.f32 %v308, %v411
    %413 = vmatmul.f32.gmra.mxu0 %v264
    %v414 = vpop.f32.mrf.mxu0
    %v415 = vadd.f32 %v308, %v414
    %416 = vmatmul.f32.gmra.mxu0 %v265
    %v417 = vpop.f32.mrf.mxu0
    %v418 = vadd.f32 %v308, %v417
    %419 = vmatmul.f32.gmra.mxu0 %v266
    %v420 = vpop.f32.mrf.mxu0
    %v421 = vadd.f32 %v308, %v420
    %422 = vmatmul.f32.gmra.mxu0 %v267
    %v423 = vpop.f32.mrf.mxu0
    %v424 = vadd.f32 %v308, %v423
    %425 = vmatmul.f32.gmra.mxu0 %v268
    %v426 = vpop.f32.mrf.mxu0
    %v427 = vadd.f32 %v308, %v426
    %428 = vmatmul.f32.gmra.mxu0 %v269
    %v429 = vpop.f32.mrf.mxu0
    %v430 = vadd.f32 %v308, %v429
    %431 = vmatmul.f32.gmra.mxu0 %v270
    %v432 = vpop.f32.mrf.mxu0
    %v433 = vadd.f32 %v308, %v432
    %434 = vmatmul.f32.gmra.mxu0 %v271
    %v435 = vpop.f32.mrf.mxu0
    %v436 = vadd.f32 %v308, %v435
    %437 = vmatmul.f32.gmra.mxu0 %v272
    %v438 = vpop.f32.mrf.mxu0
    %v439 = vadd.f32 %v308, %v438
    %440 = vdwg.mxu0
    %v441 = vld [vmem:[#allocation2] sm:$0xff]
    %v442 = vld [vmem:[#allocation2 + $0x8] sm:$0xff]
    %v443 = vld [vmem:[#allocation2 + $0x10] sm:$0xff]
    %v444 = vld [vmem:[#allocation2 + $0x18] sm:$0xff]
    %v445 = vld [vmem:[#allocation2 + $0x20] sm:$0xff]
    %v446 = vld [vmem:[#allocation2 + $0x28] sm:$0xff]
    %v447 = vld [vmem:[#allocation2 + $0x30] sm:$0xff]
    %v448 = vld [vmem:[#allocation2 + $0x38] sm:$0xff]
    %v449 = vld [vmem:[#allocation2 + $0x40] sm:$0xff]
    %v450 = vld [vmem:[#allocation2 + $0x48] sm:$0xff]
    %v451 = vld [vmem:[#allocation2 + $0x50] sm:$0xff]
    %v452 = vld [vmem:[#allocation2 + $0x58] sm:$0xff]
    %v453 = vld [vmem:[#allocation2 + $0x60] sm:$0xff]
    %v454 = vld [vmem:[#allocation2 + $0x68] sm:$0xff]
    %v455 = vld [vmem:[#allocation2 + $0x70] sm:$0xff]
    %v456 = vld [vmem:[#allocation2 + $0x78] sm:$0xff]
    %457 = vmatpush.xpose.msra.mxu0 %v374
    %458 = vmatpush.xpose.msra.mxu0 %v371
    %459 = vmatpush.xpose.msra.mxu0 %v368
    %460 = vmatpush.xpose.msra.mxu0 %v365
    %461 = vmatpush.xpose.msra.mxu0 %v362
    %462 = vmatpush.xpose.msra.mxu0 %v359
    %463 = vmatpush.xpose.msra.mxu0 %v356
    %464 = vmatpush.xpose.msra.mxu0 %v353
    %465 = vmatpush.xpose.msra.mxu0 %v350
    %466 = vmatpush.xpose.msra.mxu0 %v347
    %467 = vmatpush.xpose.msra.mxu0 %v344
    %468 = vmatpush.xpose.msra.mxu0 %v341
    %469 = vmatpush.xpose.msra.mxu0 %v338
    %470 = vmatpush.xpose.msra.mxu0 %v335
    %471 = vmatpush.xpose.msra.mxu0 %v332
    %472 = vmatpush.xpose.msra.mxu0 %v329
    %473 = vmatmul.f32.gmra.mxu0 %v441
    %v474 = vpop.f32.mrf.mxu0
    %v475 = vadd.f32 0.0, %v474
    %476 = vmatmul.f32.gmra.mxu0 %v442
    %v477 = vpop.f32.mrf.mxu0
    %v478 = vadd.f32 0.0, %v477
    %479 = vmatmul.f32.gmra.mxu0 %v443
    %v480 = vpop.f32.mrf.mxu0
    %v481 = vadd.f32 0.0, %v480
    %482 = vmatmul.f32.gmra.mxu0 %v444
    %v483 = vpop.f32.mrf.mxu0
    %v484 = vadd.f32 0.0, %v483
    %485 = vmatmul.f32.gmra.mxu0 %v445
    %v486 = vpop.f32.mrf.mxu0
    %v487 = vadd.f32 0.0, %v486
    %488 = vmatmul.f32.gmra.mxu0 %v446
    %v489 = vpop.f32.mrf.mxu0
    %v490 = vadd.f32 0.0, %v489
    %491 = vmatmul.f32.gmra.mxu0 %v447
    %v492 = vpop.f32.mrf.mxu0
    %v493 = vadd.f32 0.0, %v492
    %494 = vmatmul.f32.gmra.mxu0 %v448
    %v495 = vpop.f32.mrf.mxu0
    %v496 = vadd.f32 0.0, %v495
    %497 = vmatmul.f32.gmra.mxu0 %v449
    %v498 = vpop.f32.mrf.mxu0
    %v499 = vadd.f32 0.0, %v498
    %500 = vmatmul.f32.gmra.mxu0 %v450
    %v501 = vpop.f32.mrf.mxu0
    %v502 = vadd.f32 0.0, %v501
    %503 = vmatmul.f32.gmra.mxu0 %v451
    %v504 = vpop.f32.mrf.mxu0
    %v505 = vadd.f32 0.0, %v504
    %506 = vmatmul.f32.gmra.mxu0 %v452
    %v507 = vpop.f32.mrf.mxu0
    %v508 = vadd.f32 0.0, %v507
    %509 = vmatmul.f32.gmra.mxu0 %v453
    %v510 = vpop.f32.mrf.mxu0
    %v511 = vadd.f32 0.0, %v510
    %512 = vmatmul.f32.gmra.mxu0 %v454
    %v513 = vpop.f32.mrf.mxu0
    %v514 = vadd.f32 0.0, %v513
    %515 = vmatmul.f32.gmra.mxu0 %v455
    %v516 = vpop.f32.mrf.mxu0
    %v517 = vadd.f32 0.0, %v516
    %518 = vmatmul.f32.gmra.mxu0 %v456
    %v519 = vpop.f32.mrf.mxu0
    %v520 = vadd.f32 0.0, %v519
    %521 = vdwg.mxu0
    %s522 = smul.u32 0, 128
    %v523 = vlaneseq
    %v524 = vand.u32 %v523, 127
    %v525 = vstv %s522
    %v526 = vadd.s32 %v525, %v524
    %vm527 = vcmp.lt.s32.totalorder %v526, 8
    %v528 = vsel %vm527, %v475, -1e+30
    %v529 = vsel %vm527, %v478, -1e+30
    %v530 = vsel %vm527, %v481, -1e+30
    %v531 = vsel %vm527, %v484, -1e+30
    %v532 = vsel %vm527, %v487, -1e+30
    %v533 = vsel %vm527, %v490, -1e+30
    %v534 = vsel %vm527, %v493, -1e+30
    %v535 = vsel %vm527, %v496, -1e+30
    %v536 = vsel %vm527, %v499, -1e+30
    %v537 = vsel %vm527, %v502, -1e+30
    %v538 = vsel %vm527, %v505, -1e+30
    %v539 = vsel %vm527, %v508, -1e+30
    %v540 = vsel %vm527, %v511, -1e+30
    %v541 = vsel %vm527, %v514, -1e+30
    %v542 = vsel %vm527, %v517, -1e+30
    %v543 = vsel %vm527, %v520, -1e+30
    %v544 = vld [vmem:[#allocation3] sm:$0xff]
    %v545 = vld [vmem:[#allocation3 + $0x8] sm:$0xff]
    %v546 = vld [vmem:[#allocation3 + $0x10] sm:$0xff]
    %v547 = vld [vmem:[#allocation3 + $0x18] sm:$0xff]
    %v548 = vld [vmem:[#allocation3 + $0x20] sm:$0xff]
    %v549 = vld [vmem:[#allocation3 + $0x28] sm:$0xff]
    %v550 = vld [vmem:[#allocation3 + $0x30] sm:$0xff]
    %v551 = vld [vmem:[#allocation3 + $0x38] sm:$0xff]
    %v552 = vld [vmem:[#allocation3 + $0x40] sm:$0xff]
    %v553 = vld [vmem:[#allocation3 + $0x48] sm:$0xff]
    %v554 = vld [vmem:[#allocation3 + $0x50] sm:$0xff]
    %v555 = vld [vmem:[#allocation3 + $0x58] sm:$0xff]
    %v556 = vld [vmem:[#allocation3 + $0x60] sm:$0xff]
    %v557 = vld [vmem:[#allocation3 + $0x68] sm:$0xff]
    %v558 = vld [vmem:[#allocation3 + $0x70] sm:$0xff]
    %v559 = vld [vmem:[#allocation3 + $0x78] sm:$0xff]
    %560 = vmax.xlane.f32.xlu0 %v528
    %v561 = vpop.xlane.xlu0 %560
    %562 = vmax.xlane.f32.xlu0 %v529
    %v563 = vpop.xlane.xlu0 %562
    %564 = vmax.xlane.f32.xlu0 %v530
    %v565 = vpop.xlane.xlu0 %564
    %566 = vmax.xlane.f32.xlu0 %v531
    %v567 = vpop.xlane.xlu0 %566
    %568 = vmax.xlane.f32.xlu0 %v532
    %v569 = vpop.xlane.xlu0 %568
    %570 = vmax.xlane.f32.xlu0 %v533
    %v571 = vpop.xlane.xlu0 %570
    %572 = vmax.xlane.f32.xlu0 %v534
    %v573 = vpop.xlane.xlu0 %572
    %574 = vmax.xlane.f32.xlu0 %v535
    %v575 = vpop.xlane.xlu0 %574
    %576 = vmax.xlane.f32.xlu0 %v536
    %v577 = vpop.xlane.xlu0 %576
    %578 = vmax.xlane.f32.xlu0 %v537
    %v579 = vpop.xlane.xlu0 %578
    %580 = vmax.xlane.f32.xlu0 %v538
    %v581 = vpop.xlane.xlu0 %580
    %582 = vmax.xlane.f32.xlu0 %v539
    %v583 = vpop.xlane.xlu0 %582
    %584 = vmax.xlane.f32.xlu0 %v540
    %v585 = vpop.xlane.xlu0 %584
    %586 = vmax.xlane.f32.xlu0 %v541
    %v587 = vpop.xlane.xlu0 %586
    %588 = vmax.xlane.f32.xlu0 %v542
    %v589 = vpop.xlane.xlu0 %588
    %590 = vmax.xlane.f32.xlu0 %v543
    %v591 = vpop.xlane.xlu0 %590
    %v592 = vmax.f32 %v544, %v561
    %v593 = vmax.f32 %v545, %v563
    %v594 = vmax.f32 %v546, %v565
    %v595 = vmax.f32 %v547, %v567
    %v596 = vmax.f32 %v548, %v569
    %v597 = vmax.f32 %v549, %v571
    %v598 = vmax.f32 %v550, %v573
    %v599 = vmax.f32 %v551, %v575
    %v600 = vmax.f32 %v552, %v577
    %v601 = vmax.f32 %v553, %v579
    %v602 = vmax.f32 %v554, %v581
    %v603 = vmax.f32 %v555, %v583
    %v604 = vmax.f32 %v556, %v585
    %v605 = vmax.f32 %v557, %v587
    %v606 = vmax.f32 %v558, %v589
    %v607 = vmax.f32 %v559, %v591
    %v608 = vsub.f32 %v544, %v592
    %v609 = vsub.f32 %v545, %v593
    %v610 = vsub.f32 %v546, %v594
    %v611 = vsub.f32 %v547, %v595
    %v612 = vsub.f32 %v548, %v596
    %v613 = vsub.f32 %v549, %v597
    %v614 = vsub.f32 %v550, %v598
    %v615 = vsub.f32 %v551, %v599
    %v616 = vsub.f32 %v552, %v600
    %v617 = vsub.f32 %v553, %v601
    %v618 = vsub.f32 %v554, %v602
    %v619 = vsub.f32 %v555, %v603
    %v620 = vsub.f32 %v556, %v604
    %v621 = vsub.f32 %v557, %v605
    %v622 = vsub.f32 %v558, %v606
    %v623 = vsub.f32 %v559, %v607
    %v624 = vmul.f32 %v608, 1.442695
    %v625 = vpow.pop %v624
    %v626 = vmul.f32 %v609, 1.442695
    %v627 = vpow.pop %v626
    %v628 = vmul.f32 %v610, 1.442695
    %v629 = vpow.pop %v628
    %v630 = vmul.f32 %v611, 1.442695
    %v631 = vpow.pop %v630
    %v632 = vmul.f32 %v612, 1.442695
    %v633 = vpow.pop %v632
    %v634 = vmul.f32 %v613, 1.442695
    %v635 = vpow.pop %v634
    %v636 = vmul.f32 %v614, 1.442695
    %v637 = vpow.pop %v636
    %v638 = vmul.f32 %v615, 1.442695
    %v639 = vpow.pop %v638
    %v640 = vmul.f32 %v616, 1.442695
    %v641 = vpow.pop %v640
    %v642 = vmul.f32 %v617, 1.442695
    %v643 = vpow.pop %v642
    %v644 = vmul.f32 %v618, 1.442695
    %v645 = vpow.pop %v644
    %v646 = vmul.f32 %v619, 1.442695
    %v647 = vpow.pop %v646
    %v648 = vmul.f32 %v620, 1.442695
    %v649 = vpow.pop %v648
    %v650 = vmul.f32 %v621, 1.442695
    %v651 = vpow.pop %v650
    %v652 = vmul.f32 %v622, 1.442695
    %v653 = vpow.pop %v652
    %v654 = vmul.f32 %v623, 1.442695
    %v655 = vpow.pop %v654
    %657 = vset.pattern.permute.xlu0 0
    %658 = vperm.xlu0 %657, %v592
    %v659 = vpop.permute.xlu0 %658
    %662 = vset.pattern.permute.xlu0 0
    %663 = vperm.xlu0 %662, %v593
    %v664 = vpop.permute.xlu0 %663
    %667 = vset.pattern.permute.xlu0 0
    %668 = vperm.xlu0 %667, %v594
    %v669 = vpop.permute.xlu0 %668
    %672 = vset.pattern.permute.xlu0 0
    %673 = vperm.xlu0 %672, %v595
    %v674 = vpop.permute.xlu0 %673
    %677 = vset.pattern.permute.xlu0 0
    %678 = vperm.xlu0 %677, %v596
    %v679 = vpop.permute.xlu0 %678
    %682 = vset.pattern.permute.xlu0 0
    %683 = vperm.xlu0 %682, %v597
    %v684 = vpop.permute.xlu0 %683
    %687 = vset.pattern.permute.xlu0 0
    %688 = vperm.xlu0 %687, %v598
    %v689 = vpop.permute.xlu0 %688
    %692 = vset.pattern.permute.xlu0 0
    %693 = vperm.xlu0 %692, %v599
    %v694 = vpop.permute.xlu0 %693
    %697 = vset.pattern.permute.xlu0 0
    %698 = vperm.xlu0 %697, %v600
    %v699 = vpop.permute.xlu0 %698
    %702 = vset.pattern.permute.xlu0 0
    %703 = vperm.xlu0 %702, %v601
    %v704 = vpop.permute.xlu0 %703
    %707 = vset.pattern.permute.xlu0 0
    %708 = vperm.xlu0 %707, %v602
    %v709 = vpop.permute.xlu0 %708
    %712 = vset.pattern.permute.xlu0 0
    %713 = vperm.xlu0 %712, %v603
    %v714 = vpop.permute.xlu0 %713
    %717 = vset.pattern.permute.xlu0 0
    %718 = vperm.xlu0 %717, %v604
    %v719 = vpop.permute.xlu0 %718
    %722 = vset.pattern.permute.xlu0 0
    %723 = vperm.xlu0 %722, %v605
    %v724 = vpop.permute.xlu0 %723
    %727 = vset.pattern.permute.xlu0 0
    %728 = vperm.xlu0 %727, %v606
    %v729 = vpop.permute.xlu0 %728
    %732 = vset.pattern.permute.xlu0 0
    %733 = vperm.xlu0 %732, %v607
    %v734 = vpop.permute.xlu0 %733
    %v736 = vsub.f32 %v528, %v659
    %v737 = vsub.f32 %v529, %v664
    %v738 = vsub.f32 %v530, %v669
    %v739 = vsub.f32 %v531, %v674
    %v740 = vsub.f32 %v532, %v679
    %v741 = vsub.f32 %v533, %v684
    %v742 = vsub.f32 %v534, %v689
    %v743 = vsub.f32 %v535, %v694
    %v744 = vsub.f32 %v536, %v699
    %v745 = vsub.f32 %v537, %v704
    %v746 = vsub.f32 %v538, %v709
    %v747 = vsub.f32 %v539, %v714
    %v748 = vsub.f32 %v540, %v719
    %v749 = vsub.f32 %v541, %v724
    %v750 = vsub.f32 %v542, %v729
    %v751 = vsub.f32 %v543, %v734
    %v752 = vmul.f32 %v736, 1.442695
    %v753 = vpow.pop %v752
    %v754 = vmul.f32 %v737, 1.442695
    %v755 = vpow.pop %v754
    %v756 = vmul.f32 %v738, 1.442695
    %v757 = vpow.pop %v756
    %v758 = vmul.f32 %v739, 1.442695
    %v759 = vpow.pop %v758
    %v760 = vmul.f32 %v740, 1.442695
    %v761 = vpow.pop %v760
    %v762 = vmul.f32 %v741, 1.442695
    %v763 = vpow.pop %v762
    %v764 = vmul.f32 %v742, 1.442695
    %v765 = vpow.pop %v764
    %v766 = vmul.f32 %v743, 1.442695
    %v767 = vpow.pop %v766
    %v768 = vmul.f32 %v744, 1.442695
    %v769 = vpow.pop %v768
    %v770 = vmul.f32 %v745, 1.442695
    %v771 = vpow.pop %v770
    %v772 = vmul.f32 %v746, 1.442695
    %v773 = vpow.pop %v772
    %v774 = vmul.f32 %v747, 1.442695
    %v775 = vpow.pop %v774
    %v776 = vmul.f32 %v748, 1.442695
    %v777 = vpow.pop %v776
    %v778 = vmul.f32 %v749, 1.442695
    %v779 = vpow.pop %v778
    %v780 = vmul.f32 %v750, 1.442695
    %v781 = vpow.pop %v780
    %v782 = vmul.f32 %v751, 1.442695
    %v783 = vpow.pop %v782
    %v784 = vld [vmem:[#allocation4] sm:$0xff]
    %v785 = vld [vmem:[#allocation4 + $0x8] sm:$0xff]
    %v786 = vld [vmem:[#allocation4 + $0x10] sm:$0xff]
    %v787 = vld [vmem:[#allocation4 + $0x18] sm:$0xff]
    %v788 = vld [vmem:[#allocation4 + $0x20] sm:$0xff]
    %v789 = vld [vmem:[#allocation4 + $0x28] sm:$0xff]
    %v790 = vld [vmem:[#allocation4 + $0x30] sm:$0xff]
    %v791 = vld [vmem:[#allocation4 + $0x38] sm:$0xff]
    %v792 = vld [vmem:[#allocation4 + $0x40] sm:$0xff]
    %v793 = vld [vmem:[#allocation4 + $0x48] sm:$0xff]
    %v794 = vld [vmem:[#allocation4 + $0x50] sm:$0xff]
    %v795 = vld [vmem:[#allocation4 + $0x58] sm:$0xff]
    %v796 = vld [vmem:[#allocation4 + $0x60] sm:$0xff]
    %v797 = vld [vmem:[#allocation4 + $0x68] sm:$0xff]
    %v798 = vld [vmem:[#allocation4 + $0x70] sm:$0xff]
    %v799 = vld [vmem:[#allocation4 + $0x78] sm:$0xff]
    %v800 = vmul.f32 %v625, %v784
    %v801 = vmul.f32 %v627, %v785
    %v802 = vmul.f32 %v629, %v786
    %v803 = vmul.f32 %v631, %v787
    %v804 = vmul.f32 %v633, %v788
    %v805 = vmul.f32 %v635, %v789
    %v806 = vmul.f32 %v637, %v790
    %v807 = vmul.f32 %v639, %v791
    %v808 = vmul.f32 %v641, %v792
    %v809 = vmul.f32 %v643, %v793
    %v810 = vmul.f32 %v645, %v794
    %v811 = vmul.f32 %v647, %v795
    %v812 = vmul.f32 %v649, %v796
    %v813 = vmul.f32 %v651, %v797
    %v814 = vmul.f32 %v653, %v798
    %v815 = vmul.f32 %v655, %v799
    %816 = vadd.xlane.f32.xlu0 %v753
    %v817 = vpop.xlane.xlu0 %816
    %818 = vadd.xlane.f32.xlu0 %v755
    %v819 = vpop.xlane.xlu0 %818
    %820 = vadd.xlane.f32.xlu0 %v757
    %v821 = vpop.xlane.xlu0 %820
    %822 = vadd.xlane.f32.xlu0 %v759
    %v823 = vpop.xlane.xlu0 %822
    %824 = vadd.xlane.f32.xlu0 %v761
    %v825 = vpop.xlane.xlu0 %824
    %826 = vadd.xlane.f32.xlu0 %v763
    %v827 = vpop.xlane.xlu0 %826
    %828 = vadd.xlane.f32.xlu0 %v765
    %v829 = vpop.xlane.xlu0 %828
    %830 = vadd.xlane.f32.xlu0 %v767
    %v831 = vpop.xlane.xlu0 %830
    %832 = vadd.xlane.f32.xlu0 %v769
    %v833 = vpop.xlane.xlu0 %832
    %834 = vadd.xlane.f32.xlu0 %v771
    %v835 = vpop.xlane.xlu0 %834
    %836 = vadd.xlane.f32.xlu0 %v773
    %v837 = vpop.xlane.xlu0 %836
    %838 = vadd.xlane.f32.xlu0 %v775
    %v839 = vpop.xlane.xlu0 %838
    %840 = vadd.xlane.f32.xlu0 %v777
    %v841 = vpop.xlane.xlu0 %840
    %842 = vadd.xlane.f32.xlu0 %v779
    %v843 = vpop.xlane.xlu0 %842
    %844 = vadd.xlane.f32.xlu0 %v781
    %v845 = vpop.xlane.xlu0 %844
    %846 = vadd.xlane.f32.xlu0 %v783
    %v847 = vpop.xlane.xlu0 %846
    %v848 = vadd.f32 %v800, %v817
    %v849 = vadd.f32 %v801, %v819
    %v850 = vadd.f32 %v802, %v821
    %v851 = vadd.f32 %v803, %v823
    %v852 = vadd.f32 %v804, %v825
    %v853 = vadd.f32 %v805, %v827
    %v854 = vadd.f32 %v806, %v829
    %v855 = vadd.f32 %v807, %v831
    %v856 = vadd.f32 %v808, %v833
    %v857 = vadd.f32 %v809, %v835
    %v858 = vadd.f32 %v810, %v837
    %v859 = vadd.f32 %v811, %v839
    %v860 = vadd.f32 %v812, %v841
    %v861 = vadd.f32 %v813, %v843
    %v862 = vadd.f32 %v814, %v845
    %v863 = vadd.f32 %v815, %v847
    %vm864 = vcmask 7168
    %865 = vst.msk [vmem:[#allocation4] sm:$0xff] %vm864, %v848
    %866 = vst.msk [vmem:[#allocation4 + $0x8] sm:$0xff] %vm864, %v849
    %867 = vst.msk [vmem:[#allocation4 + $0x10] sm:$0xff] %vm864, %v850
    %868 = vst.msk [vmem:[#allocation4 + $0x18] sm:$0xff] %vm864, %v851
    %869 = vst.msk [vmem:[#allocation4 + $0x20] sm:$0xff] %vm864, %v852
    %870 = vst.msk [vmem:[#allocation4 + $0x28] sm:$0xff] %vm864, %v853
    %871 = vst.msk [vmem:[#allocation4 + $0x30] sm:$0xff] %vm864, %v854
    %872 = vst.msk [vmem:[#allocation4 + $0x38] sm:$0xff] %vm864, %v855
    %873 = vst.msk [vmem:[#allocation4 + $0x40] sm:$0xff] %vm864, %v856
    %874 = vst.msk [vmem:[#allocation4 + $0x48] sm:$0xff] %vm864, %v857
    %875 = vst.msk [vmem:[#allocation4 + $0x50] sm:$0xff] %vm864, %v858
    %876 = vst.msk [vmem:[#allocation4 + $0x58] sm:$0xff] %vm864, %v859
    %877 = vst.msk [vmem:[#allocation4 + $0x60] sm:$0xff] %vm864, %v860
    %878 = vst.msk [vmem:[#allocation4 + $0x68] sm:$0xff] %vm864, %v861
    %879 = vst.msk [vmem:[#allocation4 + $0x70] sm:$0xff] %vm864, %v862
    %880 = vst.msk [vmem:[#allocation4 + $0x78] sm:$0xff] %vm864, %v863
    %v881 = vld [vmem:[#allocation5] sm:$0xff]
    %v882 = vld [vmem:[#allocation5 + $0x8] sm:$0xff]
    %v883 = vld [vmem:[#allocation5 + $0x10] sm:$0xff]
    %v884 = vld [vmem:[#allocation5 + $0x18] sm:$0xff]
    %v885 = vld [vmem:[#allocation5 + $0x20] sm:$0xff]
    %v886 = vld [vmem:[#allocation5 + $0x28] sm:$0xff]
    %v887 = vld [vmem:[#allocation5 + $0x30] sm:$0xff]
    %v888 = vld [vmem:[#allocation5 + $0x38] sm:$0xff]
    %v889 = vld [vmem:[#allocation5 + $0x40] sm:$0xff]
    %v890 = vld [vmem:[#allocation5 + $0x48] sm:$0xff]
    %v891 = vld [vmem:[#allocation5 + $0x50] sm:$0xff]
    %v892 = vld [vmem:[#allocation5 + $0x58] sm:$0xff]
    %v893 = vld [vmem:[#allocation5 + $0x60] sm:$0xff]
    %v894 = vld [vmem:[#allocation5 + $0x68] sm:$0xff]
    %v895 = vld [vmem:[#allocation5 + $0x70] sm:$0xff]
    %v896 = vld [vmem:[#allocation5 + $0x78] sm:$0xff]
    %898 = vset.pattern.permute.xlu0 0
    %899 = vperm.xlu0 %898, %v625
    %v900 = vpop.permute.xlu0 %899
    %903 = vset.pattern.permute.xlu0 0
    %904 = vperm.xlu0 %903, %v627
    %v905 = vpop.permute.xlu0 %904
    %908 = vset.pattern.permute.xlu0 0
    %909 = vperm.xlu0 %908, %v629
    %v910 = vpop.permute.xlu0 %909
    %913 = vset.pattern.permute.xlu0 0
    %914 = vperm.xlu0 %913, %v631
    %v915 = vpop.permute.xlu0 %914
    %918 = vset.pattern.permute.xlu0 0
    %919 = vperm.xlu0 %918, %v633
    %v920 = vpop.permute.xlu0 %919
    %923 = vset.pattern.permute.xlu0 0
    %924 = vperm.xlu0 %923, %v635
    %v925 = vpop.permute.xlu0 %924
    %928 = vset.pattern.permute.xlu0 0
    %929 = vperm.xlu0 %928, %v637
    %v930 = vpop.permute.xlu0 %929
    %933 = vset.pattern.permute.xlu0 0
    %934 = vperm.xlu0 %933, %v639
    %v935 = vpop.permute.xlu0 %934
    %938 = vset.pattern.permute.xlu0 0
    %939 = vperm.xlu0 %938, %v641
    %v940 = vpop.permute.xlu0 %939
    %943 = vset.pattern.permute.xlu0 0
    %944 = vperm.xlu0 %943, %v643
    %v945 = vpop.permute.xlu0 %944
    %948 = vset.pattern.permute.xlu0 0
    %949 = vperm.xlu0 %948, %v645
    %v950 = vpop.permute.xlu0 %949
    %953 = vset.pattern.permute.xlu0 0
    %954 = vperm.xlu0 %953, %v647
    %v955 = vpop.permute.xlu0 %954
    %958 = vset.pattern.permute.xlu0 0
    %959 = vperm.xlu0 %958, %v649
    %v960 = vpop.permute.xlu0 %959
    %963 = vset.pattern.permute.xlu0 0
    %964 = vperm.xlu0 %963, %v651
    %v965 = vpop.permute.xlu0 %964
    %968 = vset.pattern.permute.xlu0 0
    %969 = vperm.xlu0 %968, %v653
    %v970 = vpop.permute.xlu0 %969
    %973 = vset.pattern.permute.xlu0 0
    %974 = vperm.xlu0 %973, %v655
    %v975 = vpop.permute.xlu0 %974
    %v977 = vmul.f32 %v900, %v881
    %v978 = vmul.f32 %v905, %v882
    %v979 = vmul.f32 %v910, %v883
    %v980 = vmul.f32 %v915, %v884
    %v981 = vmul.f32 %v920, %v885
    %v982 = vmul.f32 %v925, %v886
    %v983 = vmul.f32 %v930, %v887
    %v984 = vmul.f32 %v935, %v888
    %v985 = vmul.f32 %v940, %v889
    %v986 = vmul.f32 %v945, %v890
    %v987 = vmul.f32 %v950, %v891
    %v988 = vmul.f32 %v955, %v892
    %v989 = vmul.f32 %v960, %v893
    %v990 = vmul.f32 %v965, %v894
    %v991 = vmul.f32 %v970, %v895
    %v992 = vmul.f32 %v975, %v896
    %993 = vmatpush.msra.mxu0 %v439
    %994 = vmatpush.msra.mxu0 %v436
    %995 = vmatpush.msra.mxu0 %v433
    %996 = vmatpush.msra.mxu0 %v430
    %997 = vmatpush.msra.mxu0 %v427
    %998 = vmatpush.msra.mxu0 %v424
    %999 = vmatpush.msra.mxu0 %v421
    %1000 = vmatpush.msra.mxu0 %v418
    %1001 = vmatpush.msra.mxu0 %v415
    %1002 = vmatpush.msra.mxu0 %v412
    %1003 = vmatpush.msra.mxu0 %v409
    %1004 = vmatpush.msra.mxu0 %v406
    %1005 = vmatpush.msra.mxu0 %v403
    %1006 = vmatpush.msra.mxu0 %v400
    %1007 = vmatpush.msra.mxu0 %v397
    %1008 = vmatpush.msra.mxu0 %v394
    %1009 = vmatmul.f32.gmra.mxu0 %v753
    %v1010 = vpop.f32.mrf.mxu0
    %v1011 = vadd.f32 0.0, %v1010
    %1012 = vmatmul.f32.gmra.mxu0 %v755
    %v1013 = vpop.f32.mrf.mxu0
    %v1014 = vadd.f32 0.0, %v1013
    %1015 = vmatmul.f32.gmra.mxu0 %v757
    %v1016 = vpop.f32.mrf.mxu0
    %v1017 = vadd.f32 0.0, %v1016
    %1018 = vmatmul.f32.gmra.mxu0 %v759
    %v1019 = vpop.f32.mrf.mxu0
    %v1020 = vadd.f32 0.0, %v1019
    %1021 = vmatmul.f32.gmra.mxu0 %v761
    %v1022 = vpop.f32.mrf.mxu0
    %v1023 = vadd.f32 0.0, %v1022
    %1024 = vmatmul.f32.gmra.mxu0 %v763
    %v1025 = vpop.f32.mrf.mxu0
    %v1026 = vadd.f32 0.0, %v1025
    %1027 = vmatmul.f32.gmra.mxu0 %v765
    %v1028 = vpop.f32.mrf.mxu0
    %v1029 = vadd.f32 0.0, %v1028
    %1030 = vmatmul.f32.gmra.mxu0 %v767
    %v1031 = vpop.f32.mrf.mxu0
    %v1032 = vadd.f32 0.0, %v1031
    %1033 = vmatmul.f32.gmra.mxu0 %v769
    %v1034 = vpop.f32.mrf.mxu0
    %v1035 = vadd.f32 0.0, %v1034
    %1036 = vmatmul.f32.gmra.mxu0 %v771
    %v1037 = vpop.f32.mrf.mxu0
    %v1038 = vadd.f32 0.0, %v1037
    %1039 = vmatmul.f32.gmra.mxu0 %v773
    %v1040 = vpop.f32.mrf.mxu0
    %v1041 = vadd.f32 0.0, %v1040
    %1042 = vmatmul.f32.gmra.mxu0 %v775
    %v1043 = vpop.f32.mrf.mxu0
    %v1044 = vadd.f32 0.0, %v1043
    %1045 = vmatmul.f32.gmra.mxu0 %v777
    %v1046 = vpop.f32.mrf.mxu0
    %v1047 = vadd.f32 0.0, %v1046
    %1048 = vmatmul.f32.gmra.mxu0 %v779
    %v1049 = vpop.f32.mrf.mxu0
    %v1050 = vadd.f32 0.0, %v1049
    %1051 = vmatmul.f32.gmra.mxu0 %v781
    %v1052 = vpop.f32.mrf.mxu0
    %v1053 = vadd.f32 0.0, %v1052
    %1054 = vmatmul.f32.gmra.mxu0 %v783
    %v1055 = vpop.f32.mrf.mxu0
    %v1056 = vadd.f32 0.0, %v1055
    %1057 = vdwg.mxu0
    %v1058 = vadd.f32 %v977, %v1011
    %v1059 = vadd.f32 %v978, %v1014
    %v1060 = vadd.f32 %v979, %v1017
    %v1061 = vadd.f32 %v980, %v1020
    %v1062 = vadd.f32 %v981, %v1023
    %v1063 = vadd.f32 %v982, %v1026
    %v1064 = vadd.f32 %v983, %v1029
    %v1065 = vadd.f32 %v984, %v1032
    %v1066 = vadd.f32 %v985, %v1035
    %v1067 = vadd.f32 %v986, %v1038
    %v1068 = vadd.f32 %v987, %v1041
    %v1069 = vadd.f32 %v988, %v1044
    %v1070 = vadd.f32 %v989, %v1047
    %v1071 = vadd.f32 %v990, %v1050
    %v1072 = vadd.f32 %v991, %v1053
    %v1073 = vadd.f32 %v992, %v1056
    %1074 = vst [vmem:[#allocation5] sm:$0xff] %v1058
    %1075 = vst [vmem:[#allocation5 + $0x8] sm:$0xff] %v1059
    %1076 = vst [vmem:[#allocation5 + $0x10] sm:$0xff] %v1060
    %1077 = vst [vmem:[#allocation5 + $0x18] sm:$0xff] %v1061
    %1078 = vst [vmem:[#allocation5 + $0x20] sm:$0xff] %v1062
    %1079 = vst [vmem:[#allocation5 + $0x28] sm:$0xff] %v1063
    %1080 = vst [vmem:[#allocation5 + $0x30] sm:$0xff] %v1064
    %1081 = vst [vmem:[#allocation5 + $0x38] sm:$0xff] %v1065
    %1082 = vst [vmem:[#allocation5 + $0x40] sm:$0xff] %v1066
    %1083 = vst [vmem:[#allocation5 + $0x48] sm:$0xff] %v1067
    %1084 = vst [vmem:[#allocation5 + $0x50] sm:$0xff] %v1068
    %1085 = vst [vmem:[#allocation5 + $0x58] sm:$0xff] %v1069
    %1086 = vst [vmem:[#allocation5 + $0x60] sm:$0xff] %v1070
    %1087 = vst [vmem:[#allocation5 + $0x68] sm:$0xff] %v1071
    %1088 = vst [vmem:[#allocation5 + $0x70] sm:$0xff] %v1072
    %1089 = vst [vmem:[#allocation5 + $0x78] sm:$0xff] %v1073
    %1090 = vst.msk [vmem:[#allocation3] sm:$0xff] %vm864, %v592
    %1091 = vst.msk [vmem:[#allocation3 + $0x8] sm:$0xff] %vm864, %v593
    %1092 = vst.msk [vmem:[#allocation3 + $0x10] sm:$0xff] %vm864, %v594
    %1093 = vst.msk [vmem:[#allocation3 + $0x18] sm:$0xff] %vm864, %v595
    %1094 = vst.msk [vmem:[#allocation3 + $0x20] sm:$0xff] %vm864, %v596
    %1095 = vst.msk [vmem:[#allocation3 + $0x28] sm:$0xff] %vm864, %v597
    %1096 = vst.msk [vmem:[#allocation3 + $0x30] sm:$0xff] %vm864, %v598
    %1097 = vst.msk [vmem:[#allocation3 + $0x38] sm:$0xff] %vm864, %v599
    %1098 = vst.msk [vmem:[#allocation3 + $0x40] sm:$0xff] %vm864, %v600
    %1099 = vst.msk [vmem:[#allocation3 + $0x48] sm:$0xff] %vm864, %v601
    %1100 = vst.msk [vmem:[#allocation3 + $0x50] sm:$0xff] %vm864, %v602
    %1101 = vst.msk [vmem:[#allocation3 + $0x58] sm:$0xff] %vm864, %v603
    %1102 = vst.msk [vmem:[#allocation3 + $0x60] sm:$0xff] %vm864, %v604
    %1103 = vst.msk [vmem:[#allocation3 + $0x68] sm:$0xff] %vm864, %v605
    %1104 = vst.msk [vmem:[#allocation3 + $0x70] sm:$0xff] %vm864, %v606
    %1105 = vst.msk [vmem:[#allocation3 + $0x78] sm:$0xff] %vm864, %v607
    // Predicated region
    $region46: #{tpu_custom_call.1} parent=1 // pred_check
      %p1106 = pneg %p87
    $region47: #{tpu_custom_call.1} parent=1 // pred_check_branch
      %1108 = sbr.rel (%p1106) target = $region49
    $region48: #{tpu_custom_call.1} parent=1 // pred_region
      %v1109 = vld [vmem:[#allocation4] sm:$0xff]
      %v1110 = vld [vmem:[#allocation4 + $0x8] sm:$0xff]
      %v1111 = vld [vmem:[#allocation4 + $0x10] sm:$0xff]
      %v1112 = vld [vmem:[#allocation4 + $0x18] sm:$0xff]
      %v1113 = vld [vmem:[#allocation4 + $0x20] sm:$0xff]
      %v1114 = vld [vmem:[#allocation4 + $0x28] sm:$0xff]
      %v1115 = vld [vmem:[#allocation4 + $0x30] sm:$0xff]
      %v1116 = vld [vmem:[#allocation4 + $0x38] sm:$0xff]
      %v1117 = vld [vmem:[#allocation4 + $0x40] sm:$0xff]
      %v1118 = vld [vmem:[#allocation4 + $0x48] sm:$0xff]
      %v1119 = vld [vmem:[#allocation4 + $0x50] sm:$0xff]
      %v1120 = vld [vmem:[#allocation4 + $0x58] sm:$0xff]
      %v1121 = vld [vmem:[#allocation4 + $0x60] sm:$0xff]
      %v1122 = vld [vmem:[#allocation4 + $0x68] sm:$0xff]
      %v1123 = vld [vmem:[#allocation4 + $0x70] sm:$0xff]
      %v1124 = vld [vmem:[#allocation4 + $0x78] sm:$0xff]
      %v1125 = vrcp.pop %v1109
      %v1126 = vrcp.pop %v1110
      %v1127 = vrcp.pop %v1111
      %v1128 = vrcp.pop %v1112
      %v1129 = vrcp.pop %v1113
      %v1130 = vrcp.pop %v1114
      %v1131 = vrcp.pop %v1115
      %v1132 = vrcp.pop %v1116
      %v1133 = vrcp.pop %v1117
      %v1134 = vrcp.pop %v1118
      %v1135 = vrcp.pop %v1119
      %v1136 = vrcp.pop %v1120
      %v1137 = vrcp.pop %v1121
      %v1138 = vrcp.pop %v1122
      %v1139 = vrcp.pop %v1123
      %v1140 = vrcp.pop %v1124
      %v1141 = vmul.f32 %v1109, %v1125
      %v1142 = vmul.f32 %v1110, %v1126
      %v1143 = vmul.f32 %v1111, %v1127
      %v1144 = vmul.f32 %v1112, %v1128
      %v1145 = vmul.f32 %v1113, %v1129
      %v1146 = vmul.f32 %v1114, %v1130
      %v1147 = vmul.f32 %v1115, %v1131
      %v1148 = vmul.f32 %v1116, %v1132
      %v1149 = vmul.f32 %v1117, %v1133
      %v1150 = vmul.f32 %v1118, %v1134
      %v1151 = vmul.f32 %v1119, %v1135
      %v1152 = vmul.f32 %v1120, %v1136
      %v1153 = vmul.f32 %v1121, %v1137
      %v1154 = vmul.f32 %v1122, %v1138
      %v1155 = vmul.f32 %v1123, %v1139
      %v1156 = vmul.f32 %v1124, %v1140
      %v1157 = vsub.f32 2.0, %v1141
      %v1158 = vsub.f32 2.0, %v1142
      %v1159 = vsub.f32 2.0, %v1143
      %v1160 = vsub.f32 2.0, %v1144
      %v1161 = vsub.f32 2.0, %v1145
      %v1162 = vsub.f32 2.0, %v1146
      %v1163 = vsub.f32 2.0, %v1147
      %v1164 = vsub.f32 2.0, %v1148
      %v1165 = vsub.f32 2.0, %v1149
      %v1166 = vsub.f32 2.0, %v1150
      %v1167 = vsub.f32 2.0, %v1151
      %v1168 = vsub.f32 2.0, %v1152
      %v1169 = vsub.f32 2.0, %v1153
      %v1170 = vsub.f32 2.0, %v1154
      %v1171 = vsub.f32 2.0, %v1155
      %v1172 = vsub.f32 2.0, %v1156
      %v1173 = vmul.f32 %v1125, %v1157
      %v1174 = vmul.f32 %v1126, %v1158
      %v1175 = vmul.f32 %v1127, %v1159
      %v1176 = vmul.f32 %v1128, %v1160
      %v1177 = vmul.f32 %v1129, %v1161
      %v1178 = vmul.f32 %v1130, %v1162
      %v1179 = vmul.f32 %v1131, %v1163
      %v1180 = vmul.f32 %v1132, %v1164
      %v1181 = vmul.f32 %v1133, %v1165
      %v1182 = vmul.f32 %v1134, %v1166
      %v1183 = vmul.f32 %v1135, %v1167
      %v1184 = vmul.f32 %v1136, %v1168
      %v1185 = vmul.f32 %v1137, %v1169
      %v1186 = vmul.f32 %v1138, %v1170
      %v1187 = vmul.f32 %v1139, %v1171
      %v1188 = vmul.f32 %v1140, %v1172
      %v1189 = vld [vmem:[#allocation5] sm:$0xff]
      %v1190 = vld [vmem:[#allocation5 + $0x8] sm:$0xff]
      %v1191 = vld [vmem:[#allocation5 + $0x10] sm:$0xff]
      %v1192 = vld [vmem:[#allocation5 + $0x18] sm:$0xff]
      %v1193 = vld [vmem:[#allocation5 + $0x20] sm:$0xff]
      %v1194 = vld [vmem:[#allocation5 + $0x28] sm:$0xff]
      %v1195 = vld [vmem:[#allocation5 + $0x30] sm:$0xff]
      %v1196 = vld [vmem:[#allocation5 + $0x38] sm:$0xff]
      %v1197 = vld [vmem:[#allocation5 + $0x40] sm:$0xff]
      %v1198 = vld [vmem:[#allocation5 + $0x48] sm:$0xff]
      %v1199 = vld [vmem:[#allocation5 + $0x50] sm:$0xff]
      %v1200 = vld [vmem:[#allocation5 + $0x58] sm:$0xff]
      %v1201 = vld [vmem:[#allocation5 + $0x60] sm:$0xff]
      %v1202 = vld [vmem:[#allocation5 + $0x68] sm:$0xff]
      %v1203 = vld [vmem:[#allocation5 + $0x70] sm:$0xff]
      %v1204 = vld [vmem:[#allocation5 + $0x78] sm:$0xff]
      %1206 = vset.pattern.permute.xlu0 0
      %1207 = vperm.xlu0 %1206, %v1173
      %v1208 = vpop.permute.xlu0 %1207
      %1211 = vset.pattern.permute.xlu0 0
      %1212 = vperm.xlu0 %1211, %v1174
      %v1213 = vpop.permute.xlu0 %1212
      %1216 = vset.pattern.permute.xlu0 0
      %1217 = vperm.xlu0 %1216, %v1175
      %v1218 = vpop.permute.xlu0 %1217
      %1221 = vset.pattern.permute.xlu0 0
      %1222 = vperm.xlu0 %1221, %v1176
      %v1223 = vpop.permute.xlu0 %1222
      %1226 = vset.pattern.permute.xlu0 0
      %1227 = vperm.xlu0 %1226, %v1177
      %v1228 = vpop.permute.xlu0 %1227
      %1231 = vset.pattern.permute.xlu0 0
      %1232 = vperm.xlu0 %1231, %v1178
      %v1233 = vpop.permute.xlu0 %1232
      %1236 = vset.pattern.permute.xlu0 0
      %1237 = vperm.xlu0 %1236, %v1179
      %v1238 = vpop.permute.xlu0 %1237
      %1241 = vset.pattern.permute.xlu0 0
      %1242 = vperm.xlu0 %1241, %v1180
      %v1243 = vpop.permute.xlu0 %1242
      %1246 = vset.pattern.permute.xlu0 0
      %1247 = vperm.xlu0 %1246, %v1181
      %v1248 = vpop.permute.xlu0 %1247
      %1251 = vset.pattern.permute.xlu0 0
      %1252 = vperm.xlu0 %1251, %v1182
      %v1253 = vpop.permute.xlu0 %1252
      %1256 = vset.pattern.permute.xlu0 0
      %1257 = vperm.xlu0 %1256, %v1183
      %v1258 = vpop.permute.xlu0 %1257
      %1261 = vset.pattern.permute.xlu0 0
      %1262 = vperm.xlu0 %1261, %v1184
      %v1263 = vpop.permute.xlu0 %1262
      %1266 = vset.pattern.permute.xlu0 0
      %1267 = vperm.xlu0 %1266, %v1185
      %v1268 = vpop.permute.xlu0 %1267
      %1271 = vset.pattern.permute.xlu0 0
      %1272 = vperm.xlu0 %1271, %v1186
      %v1273 = vpop.permute.xlu0 %1272
      %1276 = vset.pattern.permute.xlu0 0
      %1277 = vperm.xlu0 %1276, %v1187
      %v1278 = vpop.permute.xlu0 %1277
      %1281 = vset.pattern.permute.xlu0 0
      %1282 = vperm.xlu0 %1281, %v1188
      %v1283 = vpop.permute.xlu0 %1282
      %v1285 = vmul.f32 %v1189, %v1208
      %v1286 = vmul.f32 %v1190, %v1213
      %v1287 = vmul.f32 %v1191, %v1218
      %v1288 = vmul.f32 %v1192, %v1223
      %v1289 = vmul.f32 %v1193, %v1228
      %v1290 = vmul.f32 %v1194, %v1233
      %v1291 = vmul.f32 %v1195, %v1238
      %v1292 = vmul.f32 %v1196, %v1243
      %v1293 = vmul.f32 %v1197, %v1248
      %v1294 = vmul.f32 %v1198, %v1253
      %v1295 = vmul.f32 %v1199, %v1258
      %v1296 = vmul.f32 %v1200, %v1263
      %v1297 = vmul.f32 %v1201, %v1268
      %v1298 = vmul.f32 %v1202, %v1273
      %v1299 = vmul.f32 %v1203, %v1278
      %v1300 = vmul.f32 %v1204, %v1283
      %1301 = vst [vmem:[#allocation14] sm:$0xff] %v1285
      %1302 = vst [vmem:[#allocation14 + $0x8] sm:$0xff] %v1286
      %1303 = vst [vmem:[#allocation14 + $0x10] sm:$0xff] %v1287
      %1304 = vst [vmem:[#allocation14 + $0x18] sm:$0xff] %v1288
      %1305 = vst [vmem:[#allocation14 + $0x20] sm:$0xff] %v1289
      %1306 = vst [vmem:[#allocation14 + $0x28] sm:$0xff] %v1290
      %1307 = vst [vmem:[#allocation14 + $0x30] sm:$0xff] %v1291
      %1308 = vst [vmem:[#allocation14 + $0x38] sm:$0xff] %v1292
      %1309 = vst [vmem:[#allocation14 + $0x40] sm:$0xff] %v1293
      %1310 = vst [vmem:[#allocation14 + $0x48] sm:$0xff] %v1294
      %1311 = vst [vmem:[#allocation14 + $0x50] sm:$0xff] %v1295
      %1312 = vst [vmem:[#allocation14 + $0x58] sm:$0xff] %v1296
      %1313 = vst [vmem:[#allocation14 + $0x60] sm:$0xff] %v1297
      %1314 = vst [vmem:[#allocation14 + $0x68] sm:$0xff] %v1298
      %1315 = vst [vmem:[#allocation14 + $0x70] sm:$0xff] %v1299
      %1316 = vst [vmem:[#allocation14 + $0x78] sm:$0xff] %v1300
    $region49: #{tpu_custom_call.1} parent=1 // pred_fallthru
      _
    // Predicated region
    $region50: #{tpu_custom_call.1} parent=1 // pred_check
      _
    $region51: #{tpu_custom_call.1} parent=1 // pred_check_branch
      %1318 = sbr.rel (0) target = $region53
    $region52: #{tpu_custom_call.1} parent=1 // pred_region
      %1320 = vsyncadd [#allocation8], 0
      %s1321 = sshll.u32 [#allocation14], 4
      %s1322 = int_to_ptr.vmem [resolvable:$true] %s1321
      %s1323 = sshll.u32 %s6, 4
      %s1324 = int_to_ptr.hbm [resolvable:$true] %s1323
      %1329 = dma.vmem_to_hbm [thread:$0]  %s1322, 2048, %s1324, [#allocation8], 128, 128, 8
    $region53: #{tpu_custom_call.1} parent=1 // pred_fallthru
      _
    // Predicated region
    $region54: #{tpu_custom_call.1} parent=1 // pred_check
      _
    $region55: #{tpu_custom_call.1} parent=1 // pred_check_branch
      %1331 = sbr.rel (0) target = $region57
    $region56: #{tpu_custom_call.1} parent=1 // pred_region
      %1333 = dma.done [#allocation8], 2048
    $region57: #{tpu_custom_call.1} parent=1 // pred_fallthru
      _
    %1334 = vsyncpa [#allocation7], 1
    %1335 = vsyncpa [#allocation10], 1
    %1336 = vsyncpa [#allocation13], 1
    %1337 = vsyncpa [#allocation8], 1

</llo_original>
